<compile_context>
chip_gen: v7x
topology: tpu7x:2x2x1
jax: 0.10.0
libtpu: 0.0.40
codegen_flags: <defaults>
</compile_context>

<pallas_src>
import functools

import jax
import jax.numpy as jnp
from jax.experimental import pallas as pl
from jax.experimental.pallas import tpu as pltpu


def mha_kernel(x_ref, bias_ref, wq_ref, wk_ref, wv_ref, wo_ref, wob_ref, o_ref,
               *, num_heads):
    # x_ref:    (BB, S, E)   block of batch rows
    # bias_ref: (S, S)       f32 additive mask bias (0 or -1e30), shared across batch
    # wq/wk/wv: (H, E, Dh)   per-head projection weights (1/sqrt(Dh) folded into Wq)
    # wo_ref:   (H, Dh, E)   per-head row-blocks of the output projection (x @ W form)
    # wob_ref:  (1, E)       output projection bias (f32)
    # o_ref:    (BB, S, E)
    BB, S, E = x_ref.shape
    H = num_heads
    cdt = wq_ref.dtype                      # MXU operand dtype (bf16 or f32)

    bias = bias_ref[...]                    # (S, S) f32, precomputed in wrapper
    wo_b = wob_ref[...]                     # (1, E) f32
    x2d = x_ref[...].reshape(BB * S, E).astype(cdt)   # one cast, major-dim merge only

    acc = jnp.zeros((BB * S, E), jnp.float32)
    for h in range(H):                      # static unroll over heads; no lane slicing
        # Per-head projections: weights indexed on the leading (head) axis — cheap.
        # preferred_element_type=cdt keeps the bf16 path cast-free (f32 MXU accum inside).
        q_h = jnp.dot(x2d, wq_ref[h], preferred_element_type=cdt).reshape(BB, S, -1)
        k_h = jnp.dot(x2d, wk_ref[h], preferred_element_type=cdt).reshape(BB, S, -1)
        v_h = jnp.dot(x2d, wv_ref[h], preferred_element_type=cdt).reshape(BB, S, -1)

        # One batched score matmul / softmax / context per head (batched over BB).
        scores = jnp.einsum("bsd,btd->bst", q_h, k_h,
                            preferred_element_type=jnp.float32) + bias     # (BB,S,S)

        # Numerically-stable softmax; all elementwise math stays f32 (v5e-safe).
        m = jnp.max(scores, axis=-1, keepdims=True)
        e = jnp.exp(scores - m)
        s = jnp.sum(e, axis=-1, keepdims=True)                              # (BB,S,1)
        attn = e * pl.reciprocal(s, approx=True)                            # EUP slot
        # TODO(synk): attention-weight nn.Dropout not implemented; equals eval / p=0.

        ctx = jnp.einsum("bst,btd->bsd", attn.astype(cdt), v_h,
                         preferred_element_type=jnp.float32)                # (BB,S,Dh)

        # Per-head slice of Wo (leading-axis indexed), accumulated in f32
        # (chained accumulating dots — maps onto MRB in-place accumulate on v7x).
        acc = acc + jnp.dot(ctx.reshape(BB * S, -1).astype(cdt), wo_ref[h],
                            preferred_element_type=jnp.float32)             # (BB*S,E)

    o_ref[...] = (acc + wo_b).reshape(BB, S, E).astype(o_ref.dtype)


def multi_head_attention(x, mask, wq, wk, wv, wo_w, wo_b, *, block_b=None,
                         operand_dtype=jnp.float32):
    """x: (B, S, E); mask: (S, S) (0 => masked, shared across batch);
    wq/wk/wv: (H, E, Dh) per-head weights in x @ W form; wo_w: (E, E); wo_b: (1, E).

    block_b=None (default) processes the whole batch in a single grid step — the right
    choice on v5e/v6e (1 TC) and at small sizes on v7x.  Pass block_b=B//2 on v7x only
    when per-step work clearly exceeds the ~0.35us step overhead.
    operand_dtype=jnp.bfloat16 is fine on every generation (v5e MXU takes bf16 natively);
    softmax / accumulation stay f32 regardless."""
    B, S, E = x.shape
    H, _, Dh = wq.shape
    assert H * Dh == E, "embed_size must equal num_heads * head_dim"
    if block_b is None:
        block_b = B                                   # single grid step by default
    assert B % block_b == 0
    grid_b = B // block_b

    # One-time weight / mask transforms (constants, not per-activation work):
    scale = 1.0 / jnp.sqrt(jnp.float32(Dh))
    wq_s = (wq * scale).astype(operand_dtype)          # (H, E, Dh), scale folded into Wq
    wk_c = wk.astype(operand_dtype)                    # (H, E, Dh)
    wv_c = wv.astype(operand_dtype)                    # (H, E, Dh)
    wo_c = wo_w.reshape(H, Dh, E).astype(operand_dtype)  # per-head row-blocks of Wo
    wo_b_f32 = wo_b.astype(jnp.float32)
    # Mask -> additive bias once, outside the kernel.  -1e30 instead of -inf: identical
    # softmax for any row with >=1 unmasked key, and no NaN on fully-masked rows.
    bias = jnp.where(mask == 0, jnp.float32(-1e30), jnp.float32(0.0))   # (S, S) f32

    kernel = functools.partial(mha_kernel, num_heads=H)

    return pl.pallas_call(
        kernel,
        out_shape=jax.ShapeDtypeStruct((B, S, E), x.dtype),
        grid_spec=pltpu.PrefetchScalarGridSpec(
            num_scalar_prefetch=0,
            grid=(grid_b,),
            in_specs=[
                pl.BlockSpec((block_b, S, E), lambda b: (b, 0, 0)),   # x
                pl.BlockSpec((S, S), lambda b: (0, 0)),               # additive bias
                pl.BlockSpec((H, E, Dh), lambda b: (0, 0, 0)),        # Wq (scaled)
                pl.BlockSpec((H, E, Dh), lambda b: (0, 0, 0)),        # Wk
                pl.BlockSpec((H, E, Dh), lambda b: (0, 0, 0)),        # Wv
                pl.BlockSpec((H, Dh, E), lambda b: (0, 0, 0)),        # Wo weight
                pl.BlockSpec((1, E), lambda b: (0, 0)),               # Wo bias
            ],
            out_specs=pl.BlockSpec((block_b, S, E), lambda b: (b, 0, 0)),
        ),
        compiler_params=pltpu.CompilerParams(
            dimension_semantics=("parallel",)),
    )(x, bias, wq_s, wk_c, wv_c, wo_c, wo_b_f32)


def reference_mha(x, mask, wq, wk, wv, wo_w, wo_b):
    """Pure-JAX reference matching the PyTorch forward (non-edu path, dropout=0)."""
    H, E, Dh = wq.shape
    outs = []
    for h in range(H):
        q = x @ wq[h]
        k = x @ wk[h]
        v = x @ wv[h]
        scores = jnp.einsum("bsd,btd->bst", q, k) / jnp.sqrt(jnp.float32(Dh))
        scores = jnp.where(mask == 0, -jnp.inf, scores)
        attn = jax.nn.softmax(scores, axis=-1)
        outs.append(jnp.einsum("bst,btd->bsd", attn, v))
    concat = jnp.concatenate(outs, axis=-1)
    return concat @ wo_w + wo_b


if __name__ == "__main__":
    # config: embed_size=32, num_attention_heads=4, dropout_prob=0.0, edu=False
    B, S, E, H = 2, 8, 32, 4
    Dh = E // H

    key = jax.random.PRNGKey(0)
    k_x, k_q, k_k, k_v, k_ow, k_ob = jax.random.split(key, 6)

    x = jax.random.normal(k_x, (B, S, E), dtype=jnp.float32)

    # causal mask shared across the batch, 0 => masked
    mask = jnp.tril(jnp.ones((S, S), dtype=jnp.int32))

    # Per-head nn.Linear(E, Dh, bias=False) weights, sampled directly in x @ W form.
    scale_in = 1.0 / jnp.sqrt(jnp.float32(E))
    wq = jax.random.uniform(k_q, (H, E, Dh), jnp.float32, -scale_in, scale_in)
    wk = jax.random.uniform(k_k, (H, E, Dh), jnp.float32, -scale_in, scale_in)
    wv = jax.random.uniform(k_v, (H, E, Dh), jnp.float32, -scale_in, scale_in)

    # Wo: nn.Linear(E, E) with bias, in x @ W form.
    wo_w = jax.random.uniform(k_ow, (E, E), jnp.float32, -scale_in, scale_in)
    wo_b = jax.random.uniform(k_ob, (1, E), jnp.float32, -scale_in, scale_in)

    ref = reference_mha(x, mask, wq, wk, wv, wo_w, wo_b)

    # Default config: f32 operands, whole batch in one grid step.
    out_f32 = jax.block_until_ready(
        multi_head_attention(x, mask, wq, wk, wv, wo_w, wo_b,
                             operand_dtype=jnp.float32))
    assert out_f32.shape == (B, S, E)
    assert jnp.allclose(out_f32, ref, atol=2e-3, rtol=2e-3), "f32 kernel mismatch"

    # bf16 MXU operands (fine on v5e/v6e/v7x), still a single grid step.
    out_bf16 = jax.block_until_ready(
        multi_head_attention(x, mask, wq, wk, wv, wo_w, wo_b,
                             operand_dtype=jnp.bfloat16))
    assert jnp.allclose(out_bf16, ref, atol=5e-2, rtol=5e-2), "bf16 kernel mismatch"

    # Split-batch path (what a v7x user would pick once per-step work is non-trivial):
    # grid=(2,) marked "parallel" so both TensorCores can take a step each.
    out_split = jax.block_until_ready(
        multi_head_attention(x, mask, wq, wk, wv, wo_w, wo_b,
                             block_b=1, operand_dtype=jnp.float32))
    assert jnp.allclose(out_split, ref, atol=2e-3, rtol=2e-3), "split kernel mismatch"

    print("KERNEL_OK")
</pallas_src>

<mosaic_0001>
module attributes {stable_mosaic.version = 11 : i64} {
  func.func @mha_kernel(%arg0: i32, %arg1: memref<2x8x32xf32, #tpu.memory_space<vmem>>, %arg2: memref<8x8xf32, #tpu.memory_space<vmem>>, %arg3: memref<4x32x8xf32, #tpu.memory_space<vmem>>, %arg4: memref<4x32x8xf32, #tpu.memory_space<vmem>>, %arg5: memref<4x32x8xf32, #tpu.memory_space<vmem>>, %arg6: memref<4x8x32xf32, #tpu.memory_space<vmem>>, %arg7: memref<1x32xf32, #tpu.memory_space<vmem>>, %arg8: memref<2x8x32xf32, #tpu.memory_space<vmem>>) attributes {dimension_semantics = [#tpu.dimension_semantics<parallel>], iteration_bounds = array<i64: 1>, scalar_prefetch = 0 : i64, scratch_operands = 0 : i64, tpu.core_type = #tpu.core_type<tc>, window_params = [{transform_indices = @transform_0, window_bounds = array<i64: 2, 8, 32>}, {pipeline_mode = #tpu.pipeline_mode<synchronous>, transform_indices = @transform_1, window_bounds = array<i64: 8, 8>}, {pipeline_mode = #tpu.pipeline_mode<synchronous>, transform_indices = @transform_2, window_bounds = array<i64: 4, 32, 8>}, {pipeline_mode = #tpu.pipeline_mode<synchronous>, transform_indices = @transform_3, window_bounds = array<i64: 4, 32, 8>}, {pipeline_mode = #tpu.pipeline_mode<synchronous>, transform_indices = @transform_4, window_bounds = array<i64: 4, 32, 8>}, {pipeline_mode = #tpu.pipeline_mode<synchronous>, transform_indices = @transform_5, window_bounds = array<i64: 4, 8, 32>}, {pipeline_mode = #tpu.pipeline_mode<synchronous>, transform_indices = @transform_6, window_bounds = array<i64: 1, 32>}, {transform_indices = @transform_7, window_bounds = array<i64: 2, 8, 32>}]} {
    %c0 = arith.constant 0 : index
    %c0_0 = arith.constant 0 : index
    %0 = vector.load %arg2[%c0, %c0_0] : memref<8x8xf32, #tpu.memory_space<vmem>>, vector<8x8xf32>
    %c0_1 = arith.constant 0 : index
    %c0_2 = arith.constant 0 : index
    %1 = vector.load %arg7[%c0_1, %c0_2] : memref<1x32xf32, #tpu.memory_space<vmem>>, vector<1x32xf32>
    %c0_3 = arith.constant 0 : index
    %c0_4 = arith.constant 0 : index
    %c0_5 = arith.constant 0 : index
    %2 = vector.load %arg1[%c0_3, %c0_4, %c0_5] : memref<2x8x32xf32, #tpu.memory_space<vmem>>, vector<2x8x32xf32>
    %3 = vector.shape_cast %2 : vector<2x8x32xf32> to vector<16x32xf32>
    %cst = arith.constant 0.000000e+00 : f32
    %4 = vector.broadcast %cst : f32 to vector<16x32xf32>
    %c0_6 = arith.constant 0 : index
    %c0_7 = arith.constant 0 : index
    %c0_8 = arith.constant 0 : index
    %5 = vector.load %arg3[%c0_6, %c0_7, %c0_8] : memref<4x32x8xf32, #tpu.memory_space<vmem>>, vector<1x32x8xf32>
    %6 = vector.shape_cast %5 : vector<1x32x8xf32> to vector<32x8xf32>
    %cst_9 = arith.constant dense<0.000000e+00> : vector<16x8xf32>
    %7 = tpu.matmul %3, %6, %cst_9 {dimension_numbers = #tpu.dot_dimension_numbers<[1], [0], [0], [1], [0, 0, 1, 1], [], []>} : vector<16x32xf32>, vector<32x8xf32>, vector<16x8xf32> -> vector<16x8xf32>
    %8 = vector.shape_cast %7 : vector<16x8xf32> to vector<2x8x8xf32>
    %c0_10 = arith.constant 0 : index
    %c0_11 = arith.constant 0 : index
    %c0_12 = arith.constant 0 : index
    %9 = vector.load %arg4[%c0_10, %c0_11, %c0_12] : memref<4x32x8xf32, #tpu.memory_space<vmem>>, vector<1x32x8xf32>
    %10 = vector.shape_cast %9 : vector<1x32x8xf32> to vector<32x8xf32>
    %cst_13 = arith.constant dense<0.000000e+00> : vector<16x8xf32>
    %11 = tpu.matmul %3, %10, %cst_13 {dimension_numbers = #tpu.dot_dimension_numbers<[1], [0], [0], [1], [0, 0, 1, 1], [], []>} : vector<16x32xf32>, vector<32x8xf32>, vector<16x8xf32> -> vector<16x8xf32>
    %12 = vector.shape_cast %11 : vector<16x8xf32> to vector<2x8x8xf32>
    %c0_14 = arith.constant 0 : index
    %c0_15 = arith.constant 0 : index
    %c0_16 = arith.constant 0 : index
    %13 = vector.load %arg5[%c0_14, %c0_15, %c0_16] : memref<4x32x8xf32, #tpu.memory_space<vmem>>, vector<1x32x8xf32>
    %14 = vector.shape_cast %13 : vector<1x32x8xf32> to vector<32x8xf32>
    %cst_17 = arith.constant dense<0.000000e+00> : vector<16x8xf32>
    %15 = tpu.matmul %3, %14, %cst_17 {dimension_numbers = #tpu.dot_dimension_numbers<[1], [0], [0], [1], [0, 0, 1, 1], [], []>} : vector<16x32xf32>, vector<32x8xf32>, vector<16x8xf32> -> vector<16x8xf32>
    %16 = vector.shape_cast %15 : vector<16x8xf32> to vector<2x8x8xf32>
    "tpu.trace_start"() <{level = 10 : i32, message = "bsd,btd->bst"}> : () -> ()
    %cst_18 = arith.constant dense<0.000000e+00> : vector<2x8x8xf32>
    %17 = tpu.matmul %8, %12, %cst_18 {dimension_numbers = #tpu.dot_dimension_numbers<[2], [2], [1], [1], [0, 0, 0, 1, 1, 1], [0], [0]>} : vector<2x8x8xf32>, vector<2x8x8xf32>, vector<2x8x8xf32> -> vector<2x8x8xf32>
    "tpu.trace_stop"() : () -> ()
    %18 = vector.shape_cast %0 : vector<8x8xf32> to vector<1x8x8xf32>
    %19 = vector.broadcast %18 : vector<1x8x8xf32> to vector<2x8x8xf32>
    %20 = arith.addf %17, %19 : vector<2x8x8xf32>
    %cst_19 = arith.constant dense<0xFF800000> : vector<2x8xf32>
    %21 = vector.multi_reduction <maximumf>, %20, %cst_19 [2] : vector<2x8x8xf32> to vector<2x8xf32>
    %22 = vector.shape_cast %21 : vector<2x8xf32> to vector<2x8x1xf32>
    %23 = vector.broadcast %22 : vector<2x8x1xf32> to vector<2x8x8xf32>
    %24 = arith.subf %20, %23 : vector<2x8x8xf32>
    %25 = math.exp %24 : vector<2x8x8xf32>
    %cst_20 = arith.constant dense<0.000000e+00> : vector<2x8xf32>
    %26 = vector.multi_reduction <add>, %25, %cst_20 [2] : vector<2x8x8xf32> to vector<2x8xf32>
    %27 = vector.shape_cast %26 : vector<2x8xf32> to vector<2x8x1xf32>
    %28 = tpu.reciprocal %27 {approx = true} : vector<2x8x1xf32> -> vector<2x8x1xf32>
    %29 = vector.broadcast %28 : vector<2x8x1xf32> to vector<2x8x8xf32>
    %30 = arith.mulf %25, %29 : vector<2x8x8xf32>
    "tpu.trace_start"() <{level = 10 : i32, message = "bst,btd->bsd"}> : () -> ()
    %cst_21 = arith.constant dense<0.000000e+00> : vector<2x8x8xf32>
    %31 = tpu.matmul %30, %16, %cst_21 {dimension_numbers = #tpu.dot_dimension_numbers<[2], [1], [1], [2], [0, 0, 0, 1, 1, 2], [0], [0]>} : vector<2x8x8xf32>, vector<2x8x8xf32>, vector<2x8x8xf32> -> vector<2x8x8xf32>
    "tpu.trace_stop"() : () -> ()
    %32 = vector.shape_cast %31 : vector<2x8x8xf32> to vector<16x8xf32>
    %c0_22 = arith.constant 0 : index
    %c0_23 = arith.constant 0 : index
    %c0_24 = arith.constant 0 : index
    %33 = vector.load %arg6[%c0_22, %c0_23, %c0_24] : memref<4x8x32xf32, #tpu.memory_space<vmem>>, vector<1x8x32xf32>
    %34 = vector.shape_cast %33 : vector<1x8x32xf32> to vector<8x32xf32>
    %cst_25 = arith.constant dense<0.000000e+00> : vector<16x32xf32>
    %35 = tpu.matmul %32, %34, %cst_25 {dimension_numbers = #tpu.dot_dimension_numbers<[1], [0], [0], [1], [0, 0, 1, 1], [], []>} : vector<16x8xf32>, vector<8x32xf32>, vector<16x32xf32> -> vector<16x32xf32>
    %36 = arith.addf %4, %35 : vector<16x32xf32>
    %c1 = arith.constant 1 : index
    %c0_26 = arith.constant 0 : index
    %c0_27 = arith.constant 0 : index
    %37 = vector.load %arg3[%c1, %c0_26, %c0_27] : memref<4x32x8xf32, #tpu.memory_space<vmem>>, vector<1x32x8xf32>
    %38 = vector.shape_cast %37 : vector<1x32x8xf32> to vector<32x8xf32>
    %cst_28 = arith.constant dense<0.000000e+00> : vector<16x8xf32>
    %39 = tpu.matmul %3, %38, %cst_28 {dimension_numbers = #tpu.dot_dimension_numbers<[1], [0], [0], [1], [0, 0, 1, 1], [], []>} : vector<16x32xf32>, vector<32x8xf32>, vector<16x8xf32> -> vector<16x8xf32>
    %40 = vector.shape_cast %39 : vector<16x8xf32> to vector<2x8x8xf32>
    %c1_29 = arith.constant 1 : index
    %c0_30 = arith.constant 0 : index
    %c0_31 = arith.constant 0 : index
    %41 = vector.load %arg4[%c1_29, %c0_30, %c0_31] : memref<4x32x8xf32, #tpu.memory_space<vmem>>, vector<1x32x8xf32>
    %42 = vector.shape_cast %41 : vector<1x32x8xf32> to vector<32x8xf32>
    %cst_32 = arith.constant dense<0.000000e+00> : vector<16x8xf32>
    %43 = tpu.matmul %3, %42, %cst_32 {dimension_numbers = #tpu.dot_dimension_numbers<[1], [0], [0], [1], [0, 0, 1, 1], [], []>} : vector<16x32xf32>, vector<32x8xf32>, vector<16x8xf32> -> vector<16x8xf32>
    %44 = vector.shape_cast %43 : vector<16x8xf32> to vector<2x8x8xf32>
    %c1_33 = arith.constant 1 : index
    %c0_34 = arith.constant 0 : index
    %c0_35 = arith.constant 0 : index
    %45 = vector.load %arg5[%c1_33, %c0_34, %c0_35] : memref<4x32x8xf32, #tpu.memory_space<vmem>>, vector<1x32x8xf32>
    %46 = vector.shape_cast %45 : vector<1x32x8xf32> to vector<32x8xf32>
    %cst_36 = arith.constant dense<0.000000e+00> : vector<16x8xf32>
    %47 = tpu.matmul %3, %46, %cst_36 {dimension_numbers = #tpu.dot_dimension_numbers<[1], [0], [0], [1], [0, 0, 1, 1], [], []>} : vector<16x32xf32>, vector<32x8xf32>, vector<16x8xf32> -> vector<16x8xf32>
    %48 = vector.shape_cast %47 : vector<16x8xf32> to vector<2x8x8xf32>
    "tpu.trace_start"() <{level = 10 : i32, message = "bsd,btd->bst"}> : () -> ()
    %cst_37 = arith.constant dense<0.000000e+00> : vector<2x8x8xf32>
    %49 = tpu.matmul %40, %44, %cst_37 {dimension_numbers = #tpu.dot_dimension_numbers<[2], [2], [1], [1], [0, 0, 0, 1, 1, 1], [0], [0]>} : vector<2x8x8xf32>, vector<2x8x8xf32>, vector<2x8x8xf32> -> vector<2x8x8xf32>
    "tpu.trace_stop"() : () -> ()
    %50 = vector.shape_cast %0 : vector<8x8xf32> to vector<1x8x8xf32>
    %51 = vector.broadcast %50 : vector<1x8x8xf32> to vector<2x8x8xf32>
    %52 = arith.addf %49, %51 : vector<2x8x8xf32>
    %cst_38 = arith.constant dense<0xFF800000> : vector<2x8xf32>
    %53 = vector.multi_reduction <maximumf>, %52, %cst_38 [2] : vector<2x8x8xf32> to vector<2x8xf32>
    %54 = vector.shape_cast %53 : vector<2x8xf32> to vector<2x8x1xf32>
    %55 = vector.broadcast %54 : vector<2x8x1xf32> to vector<2x8x8xf32>
    %56 = arith.subf %52, %55 : vector<2x8x8xf32>
    %57 = math.exp %56 : vector<2x8x8xf32>
    %cst_39 = arith.constant dense<0.000000e+00> : vector<2x8xf32>
    %58 = vector.multi_reduction <add>, %57, %cst_39 [2] : vector<2x8x8xf32> to vector<2x8xf32>
    %59 = vector.shape_cast %58 : vector<2x8xf32> to vector<2x8x1xf32>
    %60 = tpu.reciprocal %59 {approx = true} : vector<2x8x1xf32> -> vector<2x8x1xf32>
    %61 = vector.broadcast %60 : vector<2x8x1xf32> to vector<2x8x8xf32>
    %62 = arith.mulf %57, %61 : vector<2x8x8xf32>
    "tpu.trace_start"() <{level = 10 : i32, message = "bst,btd->bsd"}> : () -> ()
    %cst_40 = arith.constant dense<0.000000e+00> : vector<2x8x8xf32>
    %63 = tpu.matmul %62, %48, %cst_40 {dimension_numbers = #tpu.dot_dimension_numbers<[2], [1], [1], [2], [0, 0, 0, 1, 1, 2], [0], [0]>} : vector<2x8x8xf32>, vector<2x8x8xf32>, vector<2x8x8xf32> -> vector<2x8x8xf32>
    "tpu.trace_stop"() : () -> ()
    %64 = vector.shape_cast %63 : vector<2x8x8xf32> to vector<16x8xf32>
    %c1_41 = arith.constant 1 : index
    %c0_42 = arith.constant 0 : index
    %c0_43 = arith.constant 0 : index
    %65 = vector.load %arg6[%c1_41, %c0_42, %c0_43] : memref<4x8x32xf32, #tpu.memory_space<vmem>>, vector<1x8x32xf32>
    %66 = vector.shape_cast %65 : vector<1x8x32xf32> to vector<8x32xf32>
    %cst_44 = arith.constant dense<0.000000e+00> : vector<16x32xf32>
    %67 = tpu.matmul %64, %66, %cst_44 {dimension_numbers = #tpu.dot_dimension_numbers<[1], [0], [0], [1], [0, 0, 1, 1], [], []>} : vector<16x8xf32>, vector<8x32xf32>, vector<16x32xf32> -> vector<16x32xf32>
    %68 = arith.addf %36, %67 : vector<16x32xf32>
    %c2 = arith.constant 2 : index
    %c0_45 = arith.constant 0 : index
    %c0_46 = arith.constant 0 : index
    %69 = vector.load %arg3[%c2, %c0_45, %c0_46] : memref<4x32x8xf32, #tpu.memory_space<vmem>>, vector<1x32x8xf32>
    %70 = vector.shape_cast %69 : vector<1x32x8xf32> to vector<32x8xf32>
    %cst_47 = arith.constant dense<0.000000e+00> : vector<16x8xf32>
    %71 = tpu.matmul %3, %70, %cst_47 {dimension_numbers = #tpu.dot_dimension_numbers<[1], [0], [0], [1], [0, 0, 1, 1], [], []>} : vector<16x32xf32>, vector<32x8xf32>, vector<16x8xf32> -> vector<16x8xf32>
    %72 = vector.shape_cast %71 : vector<16x8xf32> to vector<2x8x8xf32>
    %c2_48 = arith.constant 2 : index
    %c0_49 = arith.constant 0 : index
    %c0_50 = arith.constant 0 : index
    %73 = vector.load %arg4[%c2_48, %c0_49, %c0_50] : memref<4x32x8xf32, #tpu.memory_space<vmem>>, vector<1x32x8xf32>
    %74 = vector.shape_cast %73 : vector<1x32x8xf32> to vector<32x8xf32>
    %cst_51 = arith.constant dense<0.000000e+00> : vector<16x8xf32>
    %75 = tpu.matmul %3, %74, %cst_51 {dimension_numbers = #tpu.dot_dimension_numbers<[1], [0], [0], [1], [0, 0, 1, 1], [], []>} : vector<16x32xf32>, vector<32x8xf32>, vector<16x8xf32> -> vector<16x8xf32>
    %76 = vector.shape_cast %75 : vector<16x8xf32> to vector<2x8x8xf32>
    %c2_52 = arith.constant 2 : index
    %c0_53 = arith.constant 0 : index
    %c0_54 = arith.constant 0 : index
    %77 = vector.load %arg5[%c2_52, %c0_53, %c0_54] : memref<4x32x8xf32, #tpu.memory_space<vmem>>, vector<1x32x8xf32>
    %78 = vector.shape_cast %77 : vector<1x32x8xf32> to vector<32x8xf32>
    %cst_55 = arith.constant dense<0.000000e+00> : vector<16x8xf32>
    %79 = tpu.matmul %3, %78, %cst_55 {dimension_numbers = #tpu.dot_dimension_numbers<[1], [0], [0], [1], [0, 0, 1, 1], [], []>} : vector<16x32xf32>, vector<32x8xf32>, vector<16x8xf32> -> vector<16x8xf32>
    %80 = vector.shape_cast %79 : vector<16x8xf32> to vector<2x8x8xf32>
    "tpu.trace_start"() <{level = 10 : i32, message = "bsd,btd->bst"}> : () -> ()
    %cst_56 = arith.constant dense<0.000000e+00> : vector<2x8x8xf32>
    %81 = tpu.matmul %72, %76, %cst_56 {dimension_numbers = #tpu.dot_dimension_numbers<[2], [2], [1], [1], [0, 0, 0, 1, 1, 1], [0], [0]>} : vector<2x8x8xf32>, vector<2x8x8xf32>, vector<2x8x8xf32> -> vector<2x8x8xf32>
    "tpu.trace_stop"() : () -> ()
    %82 = vector.shape_cast %0 : vector<8x8xf32> to vector<1x8x8xf32>
    %83 = vector.broadcast %82 : vector<1x8x8xf32> to vector<2x8x8xf32>
    %84 = arith.addf %81, %83 : vector<2x8x8xf32>
    %cst_57 = arith.constant dense<0xFF800000> : vector<2x8xf32>
    %85 = vector.multi_reduction <maximumf>, %84, %cst_57 [2] : vector<2x8x8xf32> to vector<2x8xf32>
    %86 = vector.shape_cast %85 : vector<2x8xf32> to vector<2x8x1xf32>
    %87 = vector.broadcast %86 : vector<2x8x1xf32> to vector<2x8x8xf32>
    %88 = arith.subf %84, %87 : vector<2x8x8xf32>
    %89 = math.exp %88 : vector<2x8x8xf32>
    %cst_58 = arith.constant dense<0.000000e+00> : vector<2x8xf32>
    %90 = vector.multi_reduction <add>, %89, %cst_58 [2] : vector<2x8x8xf32> to vector<2x8xf32>
    %91 = vector.shape_cast %90 : vector<2x8xf32> to vector<2x8x1xf32>
    %92 = tpu.reciprocal %91 {approx = true} : vector<2x8x1xf32> -> vector<2x8x1xf32>
    %93 = vector.broadcast %92 : vector<2x8x1xf32> to vector<2x8x8xf32>
    %94 = arith.mulf %89, %93 : vector<2x8x8xf32>
    "tpu.trace_start"() <{level = 10 : i32, message = "bst,btd->bsd"}> : () -> ()
    %cst_59 = arith.constant dense<0.000000e+00> : vector<2x8x8xf32>
    %95 = tpu.matmul %94, %80, %cst_59 {dimension_numbers = #tpu.dot_dimension_numbers<[2], [1], [1], [2], [0, 0, 0, 1, 1, 2], [0], [0]>} : vector<2x8x8xf32>, vector<2x8x8xf32>, vector<2x8x8xf32> -> vector<2x8x8xf32>
    "tpu.trace_stop"() : () -> ()
    %96 = vector.shape_cast %95 : vector<2x8x8xf32> to vector<16x8xf32>
    %c2_60 = arith.constant 2 : index
    %c0_61 = arith.constant 0 : index
    %c0_62 = arith.constant 0 : index
    %97 = vector.load %arg6[%c2_60, %c0_61, %c0_62] : memref<4x8x32xf32, #tpu.memory_space<vmem>>, vector<1x8x32xf32>
    %98 = vector.shape_cast %97 : vector<1x8x32xf32> to vector<8x32xf32>
    %cst_63 = arith.constant dense<0.000000e+00> : vector<16x32xf32>
    %99 = tpu.matmul %96, %98, %cst_63 {dimension_numbers = #tpu.dot_dimension_numbers<[1], [0], [0], [1], [0, 0, 1, 1], [], []>} : vector<16x8xf32>, vector<8x32xf32>, vector<16x32xf32> -> vector<16x32xf32>
    %100 = arith.addf %68, %99 : vector<16x32xf32>
    %c3 = arith.constant 3 : index
    %c0_64 = arith.constant 0 : index
    %c0_65 = arith.constant 0 : index
    %101 = vector.load %arg3[%c3, %c0_64, %c0_65] : memref<4x32x8xf32, #tpu.memory_space<vmem>>, vector<1x32x8xf32>
    %102 = vector.shape_cast %101 : vector<1x32x8xf32> to vector<32x8xf32>
    %cst_66 = arith.constant dense<0.000000e+00> : vector<16x8xf32>
    %103 = tpu.matmul %3, %102, %cst_66 {dimension_numbers = #tpu.dot_dimension_numbers<[1], [0], [0], [1], [0, 0, 1, 1], [], []>} : vector<16x32xf32>, vector<32x8xf32>, vector<16x8xf32> -> vector<16x8xf32>
    %104 = vector.shape_cast %103 : vector<16x8xf32> to vector<2x8x8xf32>
    %c3_67 = arith.constant 3 : index
    %c0_68 = arith.constant 0 : index
    %c0_69 = arith.constant 0 : index
    %105 = vector.load %arg4[%c3_67, %c0_68, %c0_69] : memref<4x32x8xf32, #tpu.memory_space<vmem>>, vector<1x32x8xf32>
    %106 = vector.shape_cast %105 : vector<1x32x8xf32> to vector<32x8xf32>
    %cst_70 = arith.constant dense<0.000000e+00> : vector<16x8xf32>
    %107 = tpu.matmul %3, %106, %cst_70 {dimension_numbers = #tpu.dot_dimension_numbers<[1], [0], [0], [1], [0, 0, 1, 1], [], []>} : vector<16x32xf32>, vector<32x8xf32>, vector<16x8xf32> -> vector<16x8xf32>
    %108 = vector.shape_cast %107 : vector<16x8xf32> to vector<2x8x8xf32>
    %c3_71 = arith.constant 3 : index
    %c0_72 = arith.constant 0 : index
    %c0_73 = arith.constant 0 : index
    %109 = vector.load %arg5[%c3_71, %c0_72, %c0_73] : memref<4x32x8xf32, #tpu.memory_space<vmem>>, vector<1x32x8xf32>
    %110 = vector.shape_cast %109 : vector<1x32x8xf32> to vector<32x8xf32>
    %cst_74 = arith.constant dense<0.000000e+00> : vector<16x8xf32>
    %111 = tpu.matmul %3, %110, %cst_74 {dimension_numbers = #tpu.dot_dimension_numbers<[1], [0], [0], [1], [0, 0, 1, 1], [], []>} : vector<16x32xf32>, vector<32x8xf32>, vector<16x8xf32> -> vector<16x8xf32>
    %112 = vector.shape_cast %111 : vector<16x8xf32> to vector<2x8x8xf32>
    "tpu.trace_start"() <{level = 10 : i32, message = "bsd,btd->bst"}> : () -> ()
    %cst_75 = arith.constant dense<0.000000e+00> : vector<2x8x8xf32>
    %113 = tpu.matmul %104, %108, %cst_75 {dimension_numbers = #tpu.dot_dimension_numbers<[2], [2], [1], [1], [0, 0, 0, 1, 1, 1], [0], [0]>} : vector<2x8x8xf32>, vector<2x8x8xf32>, vector<2x8x8xf32> -> vector<2x8x8xf32>
    "tpu.trace_stop"() : () -> ()
    %114 = vector.shape_cast %0 : vector<8x8xf32> to vector<1x8x8xf32>
    %115 = vector.broadcast %114 : vector<1x8x8xf32> to vector<2x8x8xf32>
    %116 = arith.addf %113, %115 : vector<2x8x8xf32>
    %cst_76 = arith.constant dense<0xFF800000> : vector<2x8xf32>
    %117 = vector.multi_reduction <maximumf>, %116, %cst_76 [2] : vector<2x8x8xf32> to vector<2x8xf32>
    %118 = vector.shape_cast %117 : vector<2x8xf32> to vector<2x8x1xf32>
    %119 = vector.broadcast %118 : vector<2x8x1xf32> to vector<2x8x8xf32>
    %120 = arith.subf %116, %119 : vector<2x8x8xf32>
    %121 = math.exp %120 : vector<2x8x8xf32>
    %cst_77 = arith.constant dense<0.000000e+00> : vector<2x8xf32>
    %122 = vector.multi_reduction <add>, %121, %cst_77 [2] : vector<2x8x8xf32> to vector<2x8xf32>
    %123 = vector.shape_cast %122 : vector<2x8xf32> to vector<2x8x1xf32>
    %124 = tpu.reciprocal %123 {approx = true} : vector<2x8x1xf32> -> vector<2x8x1xf32>
    %125 = vector.broadcast %124 : vector<2x8x1xf32> to vector<2x8x8xf32>
    %126 = arith.mulf %121, %125 : vector<2x8x8xf32>
    "tpu.trace_start"() <{level = 10 : i32, message = "bst,btd->bsd"}> : () -> ()
    %cst_78 = arith.constant dense<0.000000e+00> : vector<2x8x8xf32>
    %127 = tpu.matmul %126, %112, %cst_78 {dimension_numbers = #tpu.dot_dimension_numbers<[2], [1], [1], [2], [0, 0, 0, 1, 1, 2], [0], [0]>} : vector<2x8x8xf32>, vector<2x8x8xf32>, vector<2x8x8xf32> -> vector<2x8x8xf32>
    "tpu.trace_stop"() : () -> ()
    %128 = vector.shape_cast %127 : vector<2x8x8xf32> to vector<16x8xf32>
    %c3_79 = arith.constant 3 : index
    %c0_80 = arith.constant 0 : index
    %c0_81 = arith.constant 0 : index
    %129 = vector.load %arg6[%c3_79, %c0_80, %c0_81] : memref<4x8x32xf32, #tpu.memory_space<vmem>>, vector<1x8x32xf32>
    %130 = vector.shape_cast %129 : vector<1x8x32xf32> to vector<8x32xf32>
    %cst_82 = arith.constant dense<0.000000e+00> : vector<16x32xf32>
    %131 = tpu.matmul %128, %130, %cst_82 {dimension_numbers = #tpu.dot_dimension_numbers<[1], [0], [0], [1], [0, 0, 1, 1], [], []>} : vector<16x8xf32>, vector<8x32xf32>, vector<16x32xf32> -> vector<16x32xf32>
    %132 = arith.addf %100, %131 : vector<16x32xf32>
    %133 = vector.broadcast %1 : vector<1x32xf32> to vector<16x32xf32>
    %134 = arith.addf %132, %133 : vector<16x32xf32>
    %135 = vector.shape_cast %134 : vector<16x32xf32> to vector<2x8x32xf32>
    %c0_83 = arith.constant 0 : index
    %c0_84 = arith.constant 0 : index
    %c0_85 = arith.constant 0 : index
    %136 = vector.load %arg8[%c0_83, %c0_84, %c0_85] : memref<2x8x32xf32, #tpu.memory_space<vmem>>, vector<2x8x32xf32>
    tpu.vector_store %arg8[%c0_83, %c0_84, %c0_85], %135 {strides = array<i32>} : memref<2x8x32xf32, #tpu.memory_space<vmem>>, vector<2x8x32xf32>,
    return
  }
  func.func @transform_0(%arg0: i32) -> (i32, i32, i32) {
    %c0_i32 = arith.constant 0 : i32
    %c0_i32_0 = arith.constant 0 : i32
    %c0_i32_1 = arith.constant 0 : i32
    return %arg0, %c0_i32, %c0_i32_0 : i32, i32, i32
  }
  func.func @transform_1(%arg0: i32) -> (i32, i32) {
    %c0_i32 = arith.constant 0 : i32
    %c0_i32_0 = arith.constant 0 : i32
    %c0_i32_1 = arith.constant 0 : i32
    return %c0_i32, %c0_i32_0 : i32, i32
  }
  func.func @transform_2(%arg0: i32) -> (i32, i32, i32) {
    %c0_i32 = arith.constant 0 : i32
    %c0_i32_0 = arith.constant 0 : i32
    %c0_i32_1 = arith.constant 0 : i32
    %c0_i32_2 = arith.constant 0 : i32
    return %c0_i32, %c0_i32_0, %c0_i32_1 : i32, i32, i32
  }
  func.func @transform_3(%arg0: i32) -> (i32, i32, i32) {
    %c0_i32 = arith.constant 0 : i32
    %c0_i32_0 = arith.constant 0 : i32
    %c0_i32_1 = arith.constant 0 : i32
    %c0_i32_2 = arith.constant 0 : i32
    return %c0_i32, %c0_i32_0, %c0_i32_1 : i32, i32, i32
  }
  func.func @transform_4(%arg0: i32) -> (i32, i32, i32) {
    %c0_i32 = arith.constant 0 : i32
    %c0_i32_0 = arith.constant 0 : i32
    %c0_i32_1 = arith.constant 0 : i32
    %c0_i32_2 = arith.constant 0 : i32
    return %c0_i32, %c0_i32_0, %c0_i32_1 : i32, i32, i32
  }
  func.func @transform_5(%arg0: i32) -> (i32, i32, i32) {
    %c0_i32 = arith.constant 0 : i32
    %c0_i32_0 = arith.constant 0 : i32
    %c0_i32_1 = arith.constant 0 : i32
    %c0_i32_2 = arith.constant 0 : i32
    return %c0_i32, %c0_i32_0, %c0_i32_1 : i32, i32, i32
  }
  func.func @transform_6(%arg0: i32) -> (i32, i32) {
    %c0_i32 = arith.constant 0 : i32
    %c0_i32_0 = arith.constant 0 : i32
    %c0_i32_1 = arith.constant 0 : i32
    return %c0_i32, %c0_i32_0 : i32, i32
  }
  func.func @transform_7(%arg0: i32) -> (i32, i32, i32) {
    %c0_i32 = arith.constant 0 : i32
    %c0_i32_0 = arith.constant 0 : i32
    %c0_i32_1 = arith.constant 0 : i32
    return %arg0, %c0_i32, %c0_i32_0 : i32, i32, i32
  }
}

</mosaic_0001>

<llo_original>
// kernel: tpu_custom_call.1
$region0: #{tpu_custom_call.1}
  #allocation0 [shape = 'u32[]', space=smem, size = 0x4, offset = 0x4, fixed_abs, tag = 'smem constant byte address 0x4 - core index']
  #allocation1 [shape = 'u32[144,128]{1,0:T(1,128)}', space=vmem, size = 0x12000, scoped, tag = 'internal scratch']
  %s0 = inlined_call_operand.vmem [shape: f32[2,8,32], index: 0, kind: input, shape index: {}]
  %s1 = inlined_call_operand.vmem [shape: f32[8,8], index: 1, kind: input, shape index: {}]
  %s2 = inlined_call_operand.vmem [shape: f32[4,32,8], index: 2, kind: input, shape index: {}]
  %s3 = inlined_call_operand.vmem [shape: f32[4,32,8], index: 3, kind: input, shape index: {}]
  %s4 = inlined_call_operand.vmem [shape: f32[4,32,8], index: 4, kind: input, shape index: {}]
  %s5 = inlined_call_operand.vmem [shape: f32[4,8,32], index: 5, kind: input, shape index: {}]
  %s6 = inlined_call_operand.vmem [shape: f32[1,32], index: 6, kind: input, shape index: {}]
  %s7 = inlined_call_operand.hbm [shape: f32[2,8,32], index: 7, kind: output, shape index: {}]
  %s8 = sld [smem:[#allocation0]]
  $region38: #{tpu_custom_call.1} parent=0
    _
  %s10 = ssub.s32 1, %s8
  %s11 = scalar_select 0, %s10, %s8
  $region1: #{tpu_custom_call.1} parent=0
    #allocation2 [shape = 'u8[8192]{0}', space=vmem, size = 0x2000, scoped, tag = 'output window, operand 0, single buffered']
    #allocation3 [shape = 's32[1]{0}', space=sflag, size = 0x4, scoped, tag = 'scoped memory for tpu_custom_call.1']
    %12 = vsyncpa [#allocation3], 0
    // Predicated region
    $region2: #{tpu_custom_call.1} parent=1 // pred_check
      _
    $region3: #{tpu_custom_call.1} parent=1 // pred_check_branch
      %14 = sbr.rel (0) target = $region5
    $region4: #{tpu_custom_call.1} parent=1 // pred_region
      _
    $region5: #{tpu_custom_call.1} parent=1 // pred_fallthru
      _
    // Predicated region
    $region6: #{tpu_custom_call.1} parent=1 // pred_check
      _
    $region7: #{tpu_custom_call.1} parent=1 // pred_check_branch
      %16 = sbr.rel (0) target = $region9
    $region8: #{tpu_custom_call.1} parent=1 // pred_region
      _
    $region9: #{tpu_custom_call.1} parent=1 // pred_fallthru
      _
    // Predicated region
    $region10: #{tpu_custom_call.1} parent=1 // pred_check
      _
    $region11: #{tpu_custom_call.1} parent=1 // pred_check_branch
      %18 = sbr.rel (0) target = $region13
    $region12: #{tpu_custom_call.1} parent=1 // pred_region
      _
    $region13: #{tpu_custom_call.1} parent=1 // pred_fallthru
      _
    // Predicated region
    $region14: #{tpu_custom_call.1} parent=1 // pred_check
      _
    $region15: #{tpu_custom_call.1} parent=1 // pred_check_branch
      %20 = sbr.rel (0) target = $region17
    $region16: #{tpu_custom_call.1} parent=1 // pred_region
      _
    $region17: #{tpu_custom_call.1} parent=1 // pred_fallthru
      _
    // Predicated region
    $region18: #{tpu_custom_call.1} parent=1 // pred_check
      _
    $region19: #{tpu_custom_call.1} parent=1 // pred_check_branch
      %22 = sbr.rel (0) target = $region21
    $region20: #{tpu_custom_call.1} parent=1 // pred_region
      _
    $region21: #{tpu_custom_call.1} parent=1 // pred_fallthru
      _
    // Predicated region
    $region22: #{tpu_custom_call.1} parent=1 // pred_check
      _
    $region23: #{tpu_custom_call.1} parent=1 // pred_check_branch
      %24 = sbr.rel (0) target = $region25
    $region24: #{tpu_custom_call.1} parent=1 // pred_region
      _
    $region25: #{tpu_custom_call.1} parent=1 // pred_fallthru
      _
    // Predicated region
    $region26: #{tpu_custom_call.1} parent=1 // pred_check
      _
    $region27: #{tpu_custom_call.1} parent=1 // pred_check_branch
      %26 = sbr.rel (0) target = $region29
    $region28: #{tpu_custom_call.1} parent=1 // pred_region
      _
    $region29: #{tpu_custom_call.1} parent=1 // pred_fallthru
      _
    %v27 = vld [vmem:[%s1] sm:$0xff]
    %v28 = vld [vmem:[%s6] sm:$0x1]
    %v29 = vld [vmem:[%s0] sm:$0xff]
    %v30 = vld [vmem:[%s0 + $0x8] sm:$0xff]
    %v31 = vld [vmem:[%s2] sm:$0xff]
    %v32 = vld [vmem:[%s2 + $0x8] sm:$0xff]
    %v33 = vld [vmem:[%s2 + $0x10] sm:$0xff]
    %v34 = vld [vmem:[%s2 + $0x18] sm:$0xff]
    %vm35 = vcmask 261120
    %v37 = vsel %vm35, %v29, 0
    %v40 = vsel %vm35, %v30, 0
    %42 = vmatprep.subr.mxu0 0.0
    %43 = vmatpush1.msra.mxu0 %v31
    %44 = vmatprep.subr.mxu0 0.0
    %45 = vmatpush1.msra.mxu0 %v32
    %46 = vmatprep.subr.mxu0 0.0
    %47 = vmatpush1.msra.mxu0 %v33
    %48 = vmatprep.subr.mxu0 0.0
    %49 = vmatpush1.msra.mxu0 %v34
    %50 = vmatprep.subr.mxu0 0.0
    %51 = vmatpush1.msra.mxu0 0.0
    %52 = vmatprep.subr.mxu0 0.0
    %53 = vmatpush1.msra.mxu0 0.0
    %54 = vmatprep.subr.mxu0 0.0
    %55 = vmatpush1.msra.mxu0 0.0
    %56 = vmatprep.subr.mxu0 0.0
    %57 = vmatpush1.msra.mxu0 0.0
    %58 = vmatprep.subr.mxu0 0.0
    %59 = vmatpush1.msra.mxu0 0.0
    %60 = vmatprep.subr.mxu0 0.0
    %61 = vmatpush1.msra.mxu0 0.0
    %62 = vmatprep.subr.mxu0 0.0
    %63 = vmatpush1.msra.mxu0 0.0
    %64 = vmatprep.subr.mxu0 0.0
    %65 = vmatpush1.msra.mxu0 0.0
    %66 = vmatprep.subr.mxu0 0.0
    %67 = vmatpush1.msra.mxu0 0.0
    %68 = vmatprep.subr.mxu0 0.0
    %69 = vmatpush1.msra.mxu0 0.0
    %70 = vmatprep.subr.mxu0 0.0
    %71 = vmatpush1.msra.mxu0 0.0
    %72 = vmatprep.subr.mxu0 0.0
    %73 = vmatpush1.msra.mxu0 0.0
    %74 = vmatprep.subr.mxu0 0.0
    %75 = vmatpush1.msra.mxu0 0.0
    %76 = vmatprep.subr.mxu0 0.0
    %77 = vmatpush1.msra.mxu0 0.0
    %78 = vmatprep.subr.mxu0 0.0
    %79 = vmatpush1.msra.mxu0 0.0
    %80 = vmatprep.subr.mxu0 0.0
    %81 = vmatpush1.msra.mxu0 0.0
    %82 = vmatprep.subr.mxu0 0.0
    %83 = vmatpush1.msra.mxu0 0.0
    %84 = vmatprep.subr.mxu0 0.0
    %85 = vmatpush1.msra.mxu0 0.0
    %86 = vmatprep.subr.mxu0 0.0
    %87 = vmatpush1.msra.mxu0 0.0
    %88 = vmatprep.subr.mxu0 0.0
    %89 = vmatpush1.msra.mxu0 0.0
    %90 = vmatprep.subr.mxu0 0.0
    %91 = vmatpush1.msra.mxu0 0.0
    %92 = vmatprep.subr.mxu0 0.0
    %93 = vmatpush1.msra.mxu0 0.0
    %94 = vmatprep.subr.mxu0 0.0
    %95 = vmatpush1.msra.mxu0 0.0
    %96 = vmatprep.subr.mxu0 0.0
    %97 = vmatpush1.msra.mxu0 0.0
    %98 = vmatprep.subr.mxu0 0.0
    %99 = vmatpush1.msra.mxu0 0.0
    %100 = vmatprep.subr.mxu0 0.0
    %101 = vmatpush1.msra.mxu0 0.0
    %102 = vmatprep.subr.mxu0 0.0
    %103 = vmatpush1.msra.mxu0 0.0
    %104 = vmatprep.subr.mxu0 0.0
    %105 = vmatpush1.msra.mxu0 0.0
    %106 = vmatprep.mubr.f32.mxu0 0.0
    %107 = vmatmul.mubr.f32.gmra.mrb[0].mxu0 %v37
    %v108 = vpop.f32.mrb[0].mxu0
    %v109 = vadd.f32 0.0, %v108
    %v110 = vpop.f32.mrb[0].mxu0
    %111 = vmatprep.mubr.f32.mxu0 0.0
    %112 = vmatmul.mubr.f32.gmra.mrb[0].mxu0 %v40
    %v113 = vpop.f32.mrb[0].mxu0
    %v114 = vadd.f32 0.0, %v113
    %v115 = vpop.f32.mrb[0].mxu0
    %116 = vdwg.mxu0
    %v117 = vld [vmem:[%s3] sm:$0xff]
    %v118 = vld [vmem:[%s3 + $0x8] sm:$0xff]
    %v119 = vld [vmem:[%s3 + $0x10] sm:$0xff]
    %v120 = vld [vmem:[%s3 + $0x18] sm:$0xff]
    %121 = vmatprep.subr.mxu0 0.0
    %122 = vmatpush1.msra.mxu0 %v117
    %123 = vmatprep.subr.mxu0 0.0
    %124 = vmatpush1.msra.mxu0 %v118
    %125 = vmatprep.subr.mxu0 0.0
    %126 = vmatpush1.msra.mxu0 %v119
    %127 = vmatprep.subr.mxu0 0.0
    %128 = vmatpush1.msra.mxu0 %v120
    %129 = vmatprep.subr.mxu0 0.0
    %130 = vmatpush1.msra.mxu0 0.0
    %131 = vmatprep.subr.mxu0 0.0
    %132 = vmatpush1.msra.mxu0 0.0
    %133 = vmatprep.subr.mxu0 0.0
    %134 = vmatpush1.msra.mxu0 0.0
    %135 = vmatprep.subr.mxu0 0.0
    %136 = vmatpush1.msra.mxu0 0.0
    %137 = vmatprep.subr.mxu0 0.0
    %138 = vmatpush1.msra.mxu0 0.0
    %139 = vmatprep.subr.mxu0 0.0
    %140 = vmatpush1.msra.mxu0 0.0
    %141 = vmatprep.subr.mxu0 0.0
    %142 = vmatpush1.msra.mxu0 0.0
    %143 = vmatprep.subr.mxu0 0.0
    %144 = vmatpush1.msra.mxu0 0.0
    %145 = vmatprep.subr.mxu0 0.0
    %146 = vmatpush1.msra.mxu0 0.0
    %147 = vmatprep.subr.mxu0 0.0
    %148 = vmatpush1.msra.mxu0 0.0
    %149 = vmatprep.subr.mxu0 0.0
    %150 = vmatpush1.msra.mxu0 0.0
    %151 = vmatprep.subr.mxu0 0.0
    %152 = vmatpush1.msra.mxu0 0.0
    %153 = vmatprep.subr.mxu0 0.0
    %154 = vmatpush1.msra.mxu0 0.0
    %155 = vmatprep.subr.mxu0 0.0
    %156 = vmatpush1.msra.mxu0 0.0
    %157 = vmatprep.subr.mxu0 0.0
    %158 = vmatpush1.msra.mxu0 0.0
    %159 = vmatprep.subr.mxu0 0.0
    %160 = vmatpush1.msra.mxu0 0.0
    %161 = vmatprep.subr.mxu0 0.0
    %162 = vmatpush1.msra.mxu0 0.0
    %163 = vmatprep.subr.mxu0 0.0
    %164 = vmatpush1.msra.mxu0 0.0
    %165 = vmatprep.subr.mxu0 0.0
    %166 = vmatpush1.msra.mxu0 0.0
    %167 = vmatprep.subr.mxu0 0.0
    %168 = vmatpush1.msra.mxu0 0.0
    %169 = vmatprep.subr.mxu0 0.0
    %170 = vmatpush1.msra.mxu0 0.0
    %171 = vmatprep.subr.mxu0 0.0
    %172 = vmatpush1.msra.mxu0 0.0
    %173 = vmatprep.subr.mxu0 0.0
    %174 = vmatpush1.msra.mxu0 0.0
    %175 = vmatprep.subr.mxu0 0.0
    %176 = vmatpush1.msra.mxu0 0.0
    %177 = vmatprep.subr.mxu0 0.0
    %178 = vmatpush1.msra.mxu0 0.0
    %179 = vmatprep.subr.mxu0 0.0
    %180 = vmatpush1.msra.mxu0 0.0
    %181 = vmatprep.subr.mxu0 0.0
    %182 = vmatpush1.msra.mxu0 0.0
    %183 = vmatprep.subr.mxu0 0.0
    %184 = vmatpush1.msra.mxu0 0.0
    %185 = vmatprep.mubr.f32.mxu0 0.0
    %186 = vmatmul.mubr.f32.gmra.mrb[0].mxu0 %v37
    %v187 = vpop.f32.mrb[0].mxu0
    %v188 = vadd.f32 0.0, %v187
    %v189 = vpop.f32.mrb[0].mxu0
    %190 = vmatprep.mubr.f32.mxu0 0.0
    %191 = vmatmul.mubr.f32.gmra.mrb[0].mxu0 %v40
    %v192 = vpop.f32.mrb[0].mxu0
    %v193 = vadd.f32 0.0, %v192
    %v194 = vpop.f32.mrb[0].mxu0
    %195 = vdwg.mxu0
    %v196 = vld [vmem:[%s4] sm:$0xff]
    %v197 = vld [vmem:[%s4 + $0x8] sm:$0xff]
    %v198 = vld [vmem:[%s4 + $0x10] sm:$0xff]
    %v199 = vld [vmem:[%s4 + $0x18] sm:$0xff]
    %200 = vmatprep.subr.mxu0 0.0
    %201 = vmatpush1.msra.mxu0 %v196
    %202 = vmatprep.subr.mxu0 0.0
    %203 = vmatpush1.msra.mxu0 %v197
    %204 = vmatprep.subr.mxu0 0.0
    %205 = vmatpush1.msra.mxu0 %v198
    %206 = vmatprep.subr.mxu0 0.0
    %207 = vmatpush1.msra.mxu0 %v199
    %208 = vmatprep.subr.mxu0 0.0
    %209 = vmatpush1.msra.mxu0 0.0
    %210 = vmatprep.subr.mxu0 0.0
    %211 = vmatpush1.msra.mxu0 0.0
    %212 = vmatprep.subr.mxu0 0.0
    %213 = vmatpush1.msra.mxu0 0.0
    %214 = vmatprep.subr.mxu0 0.0
    %215 = vmatpush1.msra.mxu0 0.0
    %216 = vmatprep.subr.mxu0 0.0
    %217 = vmatpush1.msra.mxu0 0.0
    %218 = vmatprep.subr.mxu0 0.0
    %219 = vmatpush1.msra.mxu0 0.0
    %220 = vmatprep.subr.mxu0 0.0
    %221 = vmatpush1.msra.mxu0 0.0
    %222 = vmatprep.subr.mxu0 0.0
    %223 = vmatpush1.msra.mxu0 0.0
    %224 = vmatprep.subr.mxu0 0.0
    %225 = vmatpush1.msra.mxu0 0.0
    %226 = vmatprep.subr.mxu0 0.0
    %227 = vmatpush1.msra.mxu0 0.0
    %228 = vmatprep.subr.mxu0 0.0
    %229 = vmatpush1.msra.mxu0 0.0
    %230 = vmatprep.subr.mxu0 0.0
    %231 = vmatpush1.msra.mxu0 0.0
    %232 = vmatprep.subr.mxu0 0.0
    %233 = vmatpush1.msra.mxu0 0.0
    %234 = vmatprep.subr.mxu0 0.0
    %235 = vmatpush1.msra.mxu0 0.0
    %236 = vmatprep.subr.mxu0 0.0
    %237 = vmatpush1.msra.mxu0 0.0
    %238 = vmatprep.subr.mxu0 0.0
    %239 = vmatpush1.msra.mxu0 0.0
    %240 = vmatprep.subr.mxu0 0.0
    %241 = vmatpush1.msra.mxu0 0.0
    %242 = vmatprep.subr.mxu0 0.0
    %243 = vmatpush1.msra.mxu0 0.0
    %244 = vmatprep.subr.mxu0 0.0
    %245 = vmatpush1.msra.mxu0 0.0
    %246 = vmatprep.subr.mxu0 0.0
    %247 = vmatpush1.msra.mxu0 0.0
    %248 = vmatprep.subr.mxu0 0.0
    %249 = vmatpush1.msra.mxu0 0.0
    %250 = vmatprep.subr.mxu0 0.0
    %251 = vmatpush1.msra.mxu0 0.0
    %252 = vmatprep.subr.mxu0 0.0
    %253 = vmatpush1.msra.mxu0 0.0
    %254 = vmatprep.subr.mxu0 0.0
    %255 = vmatpush1.msra.mxu0 0.0
    %256 = vmatprep.subr.mxu0 0.0
    %257 = vmatpush1.msra.mxu0 0.0
    %258 = vmatprep.subr.mxu0 0.0
    %259 = vmatpush1.msra.mxu0 0.0
    %260 = vmatprep.subr.mxu0 0.0
    %261 = vmatpush1.msra.mxu0 0.0
    %262 = vmatprep.subr.mxu0 0.0
    %263 = vmatpush1.msra.mxu0 0.0
    %264 = vmatprep.mubr.f32.mxu0 0.0
    %265 = vmatmul.mubr.f32.gmra.mrb[0].mxu0 %v37
    %v266 = vpop.f32.mrb[0].mxu0
    %v267 = vadd.f32 0.0, %v266
    %v268 = vpop.f32.mrb[0].mxu0
    %269 = vmatprep.mubr.f32.mxu0 0.0
    %270 = vmatmul.mubr.f32.gmra.mrb[0].mxu0 %v40
    %v271 = vpop.f32.mrb[0].mxu0
    %v272 = vadd.f32 0.0, %v271
    %v273 = vpop.f32.mrb[0].mxu0
    %274 = vdwg.mxu0
    %vm275 = vcmask 64512
    %v277 = vsel %vm275, %v109, 0
    %v280 = vsel %vm275, %v188, 0
    %282 = vmatprep.subr.mxu0 0.0
    %283 = vmatpush1.xpose.msra.mxu0 %v280
    %284 = vmatprep.subr.mxu0 0.0
    %285 = vmatpush1.xpose.msra.mxu0 0.0
    %286 = vmatprep.subr.mxu0 0.0
    %287 = vmatpush1.xpose.msra.mxu0 0.0
    %288 = vmatprep.subr.mxu0 0.0
    %289 = vmatpush1.xpose.msra.mxu0 0.0
    %290 = vmatprep.subr.mxu0 0.0
    %291 = vmatpush1.xpose.msra.mxu0 0.0
    %292 = vmatprep.subr.mxu0 0.0
    %293 = vmatpush1.xpose.msra.mxu0 0.0
    %294 = vmatprep.subr.mxu0 0.0
    %295 = vmatpush1.xpose.msra.mxu0 0.0
    %296 = vmatprep.subr.mxu0 0.0
    %297 = vmatpush1.xpose.msra.mxu0 0.0
    %298 = vmatprep.subr.mxu0 0.0
    %299 = vmatpush1.xpose.msra.mxu0 0.0
    %300 = vmatprep.subr.mxu0 0.0
    %301 = vmatpush1.xpose.msra.mxu0 0.0
    %302 = vmatprep.subr.mxu0 0.0
    %303 = vmatpush1.xpose.msra.mxu0 0.0
    %304 = vmatprep.subr.mxu0 0.0
    %305 = vmatpush1.xpose.msra.mxu0 0.0
    %306 = vmatprep.subr.mxu0 0.0
    %307 = vmatpush1.xpose.msra.mxu0 0.0
    %308 = vmatprep.subr.mxu0 0.0
    %309 = vmatpush1.xpose.msra.mxu0 0.0
    %310 = vmatprep.subr.mxu0 0.0
    %311 = vmatpush1.xpose.msra.mxu0 0.0
    %312 = vmatprep.subr.mxu0 0.0
    %313 = vmatpush1.xpose.msra.mxu0 0.0
    %314 = vmatprep.subr.mxu0 0.0
    %315 = vmatpush1.xpose.msra.mxu0 0.0
    %316 = vmatprep.subr.mxu0 0.0
    %317 = vmatpush1.xpose.msra.mxu0 0.0
    %318 = vmatprep.subr.mxu0 0.0
    %319 = vmatpush1.xpose.msra.mxu0 0.0
    %320 = vmatprep.subr.mxu0 0.0
    %321 = vmatpush1.xpose.msra.mxu0 0.0
    %322 = vmatprep.subr.mxu0 0.0
    %323 = vmatpush1.xpose.msra.mxu0 0.0
    %324 = vmatprep.subr.mxu0 0.0
    %325 = vmatpush1.xpose.msra.mxu0 0.0
    %326 = vmatprep.subr.mxu0 0.0
    %327 = vmatpush1.xpose.msra.mxu0 0.0
    %328 = vmatprep.subr.mxu0 0.0
    %329 = vmatpush1.xpose.msra.mxu0 0.0
    %330 = vmatprep.subr.mxu0 0.0
    %331 = vmatpush1.xpose.msra.mxu0 0.0
    %332 = vmatprep.subr.mxu0 0.0
    %333 = vmatpush1.xpose.msra.mxu0 0.0
    %334 = vmatprep.subr.mxu0 0.0
    %335 = vmatpush1.xpose.msra.mxu0 0.0
    %336 = vmatprep.subr.mxu0 0.0
    %337 = vmatpush1.xpose.msra.mxu0 0.0
    %338 = vmatprep.subr.mxu0 0.0
    %339 = vmatpush1.xpose.msra.mxu0 0.0
    %340 = vmatprep.subr.mxu0 0.0
    %341 = vmatpush1.xpose.msra.mxu0 0.0
    %342 = vmatprep.subr.mxu0 0.0
    %343 = vmatpush1.xpose.msra.mxu0 0.0
    %344 = vmatprep.subr.mxu0 0.0
    %345 = vmatpush1.xpose.msra.mxu0 0.0
    %346 = vmatprep.mubr.f32.mxu0 0.0
    %347 = vmatmul.mubr.f32.gmra.mrb[0].mxu0 %v277
    %v348 = vpop.f32.mrb[0].mxu0
    %v349 = vadd.f32 %v27, %v348
    %v350 = vpop.f32.mrb[0].mxu0
    %351 = vdwg.mxu0
    %v353 = vsel %vm275, %v114, 0
    %v356 = vsel %vm275, %v193, 0
    %358 = vmatprep.subr.mxu0 0.0
    %359 = vmatpush1.xpose.msra.mxu0 %v356
    %360 = vmatprep.subr.mxu0 0.0
    %361 = vmatpush1.xpose.msra.mxu0 0.0
    %362 = vmatprep.subr.mxu0 0.0
    %363 = vmatpush1.xpose.msra.mxu0 0.0
    %364 = vmatprep.subr.mxu0 0.0
    %365 = vmatpush1.xpose.msra.mxu0 0.0
    %366 = vmatprep.subr.mxu0 0.0
    %367 = vmatpush1.xpose.msra.mxu0 0.0
    %368 = vmatprep.subr.mxu0 0.0
    %369 = vmatpush1.xpose.msra.mxu0 0.0
    %370 = vmatprep.subr.mxu0 0.0
    %371 = vmatpush1.xpose.msra.mxu0 0.0
    %372 = vmatprep.subr.mxu0 0.0
    %373 = vmatpush1.xpose.msra.mxu0 0.0
    %374 = vmatprep.subr.mxu0 0.0
    %375 = vmatpush1.xpose.msra.mxu0 0.0
    %376 = vmatprep.subr.mxu0 0.0
    %377 = vmatpush1.xpose.msra.mxu0 0.0
    %378 = vmatprep.subr.mxu0 0.0
    %379 = vmatpush1.xpose.msra.mxu0 0.0
    %380 = vmatprep.subr.mxu0 0.0
    %381 = vmatpush1.xpose.msra.mxu0 0.0
    %382 = vmatprep.subr.mxu0 0.0
    %383 = vmatpush1.xpose.msra.mxu0 0.0
    %384 = vmatprep.subr.mxu0 0.0
    %385 = vmatpush1.xpose.msra.mxu0 0.0
    %386 = vmatprep.subr.mxu0 0.0
    %387 = vmatpush1.xpose.msra.mxu0 0.0
    %388 = vmatprep.subr.mxu0 0.0
    %389 = vmatpush1.xpose.msra.mxu0 0.0
    %390 = vmatprep.subr.mxu0 0.0
    %391 = vmatpush1.xpose.msra.mxu0 0.0
    %392 = vmatprep.subr.mxu0 0.0
    %393 = vmatpush1.xpose.msra.mxu0 0.0
    %394 = vmatprep.subr.mxu0 0.0
    %395 = vmatpush1.xpose.msra.mxu0 0.0
    %396 = vmatprep.subr.mxu0 0.0
    %397 = vmatpush1.xpose.msra.mxu0 0.0
    %398 = vmatprep.subr.mxu0 0.0
    %399 = vmatpush1.xpose.msra.mxu0 0.0
    %400 = vmatprep.subr.mxu0 0.0
    %401 = vmatpush1.xpose.msra.mxu0 0.0
    %402 = vmatprep.subr.mxu0 0.0
    %403 = vmatpush1.xpose.msra.mxu0 0.0
    %404 = vmatprep.subr.mxu0 0.0
    %405 = vmatpush1.xpose.msra.mxu0 0.0
    %406 = vmatprep.subr.mxu0 0.0
    %407 = vmatpush1.xpose.msra.mxu0 0.0
    %408 = vmatprep.subr.mxu0 0.0
    %409 = vmatpush1.xpose.msra.mxu0 0.0
    %410 = vmatprep.subr.mxu0 0.0
    %411 = vmatpush1.xpose.msra.mxu0 0.0
    %412 = vmatprep.subr.mxu0 0.0
    %413 = vmatpush1.xpose.msra.mxu0 0.0
    %414 = vmatprep.subr.mxu0 0.0
    %415 = vmatpush1.xpose.msra.mxu0 0.0
    %416 = vmatprep.subr.mxu0 0.0
    %417 = vmatpush1.xpose.msra.mxu0 0.0
    %418 = vmatprep.subr.mxu0 0.0
    %419 = vmatpush1.xpose.msra.mxu0 0.0
    %420 = vmatprep.subr.mxu0 0.0
    %421 = vmatpush1.xpose.msra.mxu0 0.0
    %422 = vmatprep.mubr.f32.mxu0 0.0
    %423 = vmatmul.mubr.f32.gmra.mrb[0].mxu0 %v353
    %v424 = vpop.f32.mrb[0].mxu0
    %v425 = vadd.f32 %v27, %v424
    %v426 = vpop.f32.mrb[0].mxu0
    %427 = vdwg.mxu0
    %v428 = vsel %vm275, %v349, -inf
    %429 = vmax.xlane.f32.xlu0 %v428
    %v430 = vpop.xlane.xlu0 %429
    %v431 = vsel %vm275, %v425, -inf
    %432 = vmax.xlane.f32.xlu0 %v431
    %v433 = vpop.xlane.xlu0 %432
    %v434 = vsub.f32 %v349, %v430
    %v435 = vsub.f32 %v425, %v433
    %v436 = vmul.f32 %v434, 1.442695
    %v437 = vpow.pop %v436
    %v438 = vmul.f32 %v435, 1.442695
    %v439 = vpow.pop %v438
    %v440 = vsel %vm275, %v437, 0.0
    %441 = vadd.xlane.f32.xlu0 %v440
    %v442 = vpop.xlane.xlu0 %441
    %v443 = vsel %vm275, %v439, 0.0
    %444 = vadd.xlane.f32.xlu0 %v443
    %v445 = vpop.xlane.xlu0 %444
    %v446 = vrcp.pop %v442
    %v447 = vrcp.pop %v445
    %v448 = vmul.f32 %v437, %v446
    %v449 = vmul.f32 %v439, %v447
    %v451 = vsel %vm275, %v448, 0
    %453 = vmatprep.subr.mxu0 0.0
    %454 = vmatpush1.msra.mxu0 %v267
    %455 = vmatprep.subr.mxu0 0.0
    %456 = vmatpush1.msra.mxu0 0.0
    %457 = vmatprep.subr.mxu0 0.0
    %458 = vmatpush1.msra.mxu0 0.0
    %459 = vmatprep.subr.mxu0 0.0
    %460 = vmatpush1.msra.mxu0 0.0
    %461 = vmatprep.subr.mxu0 0.0
    %462 = vmatpush1.msra.mxu0 0.0
    %463 = vmatprep.subr.mxu0 0.0
    %464 = vmatpush1.msra.mxu0 0.0
    %465 = vmatprep.subr.mxu0 0.0
    %466 = vmatpush1.msra.mxu0 0.0
    %467 = vmatprep.subr.mxu0 0.0
    %468 = vmatpush1.msra.mxu0 0.0
    %469 = vmatprep.subr.mxu0 0.0
    %470 = vmatpush1.msra.mxu0 0.0
    %471 = vmatprep.subr.mxu0 0.0
    %472 = vmatpush1.msra.mxu0 0.0
    %473 = vmatprep.subr.mxu0 0.0
    %474 = vmatpush1.msra.mxu0 0.0
    %475 = vmatprep.subr.mxu0 0.0
    %476 = vmatpush1.msra.mxu0 0.0
    %477 = vmatprep.subr.mxu0 0.0
    %478 = vmatpush1.msra.mxu0 0.0
    %479 = vmatprep.subr.mxu0 0.0
    %480 = vmatpush1.msra.mxu0 0.0
    %481 = vmatprep.subr.mxu0 0.0
    %482 = vmatpush1.msra.mxu0 0.0
    %483 = vmatprep.subr.mxu0 0.0
    %484 = vmatpush1.msra.mxu0 0.0
    %485 = vmatprep.subr.mxu0 0.0
    %486 = vmatpush1.msra.mxu0 0.0
    %487 = vmatprep.subr.mxu0 0.0
    %488 = vmatpush1.msra.mxu0 0.0
    %489 = vmatprep.subr.mxu0 0.0
    %490 = vmatpush1.msra.mxu0 0.0
    %491 = vmatprep.subr.mxu0 0.0
    %492 = vmatpush1.msra.mxu0 0.0
    %493 = vmatprep.subr.mxu0 0.0
    %494 = vmatpush1.msra.mxu0 0.0
    %495 = vmatprep.subr.mxu0 0.0
    %496 = vmatpush1.msra.mxu0 0.0
    %497 = vmatprep.subr.mxu0 0.0
    %498 = vmatpush1.msra.mxu0 0.0
    %499 = vmatprep.subr.mxu0 0.0
    %500 = vmatpush1.msra.mxu0 0.0
    %501 = vmatprep.subr.mxu0 0.0
    %502 = vmatpush1.msra.mxu0 0.0
    %503 = vmatprep.subr.mxu0 0.0
    %504 = vmatpush1.msra.mxu0 0.0
    %505 = vmatprep.subr.mxu0 0.0
    %506 = vmatpush1.msra.mxu0 0.0
    %507 = vmatprep.subr.mxu0 0.0
    %508 = vmatpush1.msra.mxu0 0.0
    %509 = vmatprep.subr.mxu0 0.0
    %510 = vmatpush1.msra.mxu0 0.0
    %511 = vmatprep.subr.mxu0 0.0
    %512 = vmatpush1.msra.mxu0 0.0
    %513 = vmatprep.subr.mxu0 0.0
    %514 = vmatpush1.msra.mxu0 0.0
    %515 = vmatprep.subr.mxu0 0.0
    %516 = vmatpush1.msra.mxu0 0.0
    %517 = vmatprep.mubr.f32.mxu0 0.0
    %518 = vmatmul.mubr.f32.gmra.mrb[0].mxu0 %v451
    %v519 = vpop.f32.mrb[0].mxu0
    %v520 = vadd.f32 0.0, %v519
    %v521 = vpop.f32.mrb[0].mxu0
    %522 = vdwg.mxu0
    %v524 = vsel %vm275, %v449, 0
    %526 = vmatprep.subr.mxu0 0.0
    %527 = vmatpush1.msra.mxu0 %v272
    %528 = vmatprep.subr.mxu0 0.0
    %529 = vmatpush1.msra.mxu0 0.0
    %530 = vmatprep.subr.mxu0 0.0
    %531 = vmatpush1.msra.mxu0 0.0
    %532 = vmatprep.subr.mxu0 0.0
    %533 = vmatpush1.msra.mxu0 0.0
    %534 = vmatprep.subr.mxu0 0.0
    %535 = vmatpush1.msra.mxu0 0.0
    %536 = vmatprep.subr.mxu0 0.0
    %537 = vmatpush1.msra.mxu0 0.0
    %538 = vmatprep.subr.mxu0 0.0
    %539 = vmatpush1.msra.mxu0 0.0
    %540 = vmatprep.subr.mxu0 0.0
    %541 = vmatpush1.msra.mxu0 0.0
    %542 = vmatprep.subr.mxu0 0.0
    %543 = vmatpush1.msra.mxu0 0.0
    %544 = vmatprep.subr.mxu0 0.0
    %545 = vmatpush1.msra.mxu0 0.0
    %546 = vmatprep.subr.mxu0 0.0
    %547 = vmatpush1.msra.mxu0 0.0
    %548 = vmatprep.subr.mxu0 0.0
    %549 = vmatpush1.msra.mxu0 0.0
    %550 = vmatprep.subr.mxu0 0.0
    %551 = vmatpush1.msra.mxu0 0.0
    %552 = vmatprep.subr.mxu0 0.0
    %553 = vmatpush1.msra.mxu0 0.0
    %554 = vmatprep.subr.mxu0 0.0
    %555 = vmatpush1.msra.mxu0 0.0
    %556 = vmatprep.subr.mxu0 0.0
    %557 = vmatpush1.msra.mxu0 0.0
    %558 = vmatprep.subr.mxu0 0.0
    %559 = vmatpush1.msra.mxu0 0.0
    %560 = vmatprep.subr.mxu0 0.0
    %561 = vmatpush1.msra.mxu0 0.0
    %562 = vmatprep.subr.mxu0 0.0
    %563 = vmatpush1.msra.mxu0 0.0
    %564 = vmatprep.subr.mxu0 0.0
    %565 = vmatpush1.msra.mxu0 0.0
    %566 = vmatprep.subr.mxu0 0.0
    %567 = vmatpush1.msra.mxu0 0.0
    %568 = vmatprep.subr.mxu0 0.0
    %569 = vmatpush1.msra.mxu0 0.0
    %570 = vmatprep.subr.mxu0 0.0
    %571 = vmatpush1.msra.mxu0 0.0
    %572 = vmatprep.subr.mxu0 0.0
    %573 = vmatpush1.msra.mxu0 0.0
    %574 = vmatprep.subr.mxu0 0.0
    %575 = vmatpush1.msra.mxu0 0.0
    %576 = vmatprep.subr.mxu0 0.0
    %577 = vmatpush1.msra.mxu0 0.0
    %578 = vmatprep.subr.mxu0 0.0
    %579 = vmatpush1.msra.mxu0 0.0
    %580 = vmatprep.subr.mxu0 0.0
    %581 = vmatpush1.msra.mxu0 0.0
    %582 = vmatprep.subr.mxu0 0.0
    %583 = vmatpush1.msra.mxu0 0.0
    %584 = vmatprep.subr.mxu0 0.0
    %585 = vmatpush1.msra.mxu0 0.0
    %586 = vmatprep.subr.mxu0 0.0
    %587 = vmatpush1.msra.mxu0 0.0
    %588 = vmatprep.subr.mxu0 0.0
    %589 = vmatpush1.msra.mxu0 0.0
    %590 = vmatprep.mubr.f32.mxu0 0.0
    %591 = vmatmul.mubr.f32.gmra.mrb[0].mxu0 %v524
    %v592 = vpop.f32.mrb[0].mxu0
    %v593 = vadd.f32 0.0, %v592
    %v594 = vpop.f32.mrb[0].mxu0
    %595 = vdwg.mxu0
    %v596 = vld [vmem:[%s5] sm:$0xff]
    %s597 = scalar_lea.vmem %s2, 32
    %v598 = vld [vmem:[%s597] sm:$0xff]
    %v599 = vld [vmem:[%s597 + $0x8] sm:$0xff]
    %v600 = vld [vmem:[%s597 + $0x10] sm:$0xff]
    %v601 = vld [vmem:[%s597 + $0x18] sm:$0xff]
    %602 = vmatprep.subr.mxu0 0.0
    %603 = vmatpush1.msra.mxu0 %v598
    %604 = vmatprep.subr.mxu0 0.0
    %605 = vmatpush1.msra.mxu0 %v599
    %606 = vmatprep.subr.mxu0 0.0
    %607 = vmatpush1.msra.mxu0 %v600
    %608 = vmatprep.subr.mxu0 0.0
    %609 = vmatpush1.msra.mxu0 %v601
    %610 = vmatprep.subr.mxu0 0.0
    %611 = vmatpush1.msra.mxu0 0.0
    %612 = vmatprep.subr.mxu0 0.0
    %613 = vmatpush1.msra.mxu0 0.0
    %614 = vmatprep.subr.mxu0 0.0
    %615 = vmatpush1.msra.mxu0 0.0
    %616 = vmatprep.subr.mxu0 0.0
    %617 = vmatpush1.msra.mxu0 0.0
    %618 = vmatprep.subr.mxu0 0.0
    %619 = vmatpush1.msra.mxu0 0.0
    %620 = vmatprep.subr.mxu0 0.0
    %621 = vmatpush1.msra.mxu0 0.0
    %622 = vmatprep.subr.mxu0 0.0
    %623 = vmatpush1.msra.mxu0 0.0
    %624 = vmatprep.subr.mxu0 0.0
    %625 = vmatpush1.msra.mxu0 0.0
    %626 = vmatprep.subr.mxu0 0.0
    %627 = vmatpush1.msra.mxu0 0.0
    %628 = vmatprep.subr.mxu0 0.0
    %629 = vmatpush1.msra.mxu0 0.0
    %630 = vmatprep.subr.mxu0 0.0
    %631 = vmatpush1.msra.mxu0 0.0
    %632 = vmatprep.subr.mxu0 0.0
    %633 = vmatpush1.msra.mxu0 0.0
    %634 = vmatprep.subr.mxu0 0.0
    %635 = vmatpush1.msra.mxu0 0.0
    %636 = vmatprep.subr.mxu0 0.0
    %637 = vmatpush1.msra.mxu0 0.0
    %638 = vmatprep.subr.mxu0 0.0
    %639 = vmatpush1.msra.mxu0 0.0
    %640 = vmatprep.subr.mxu0 0.0
    %641 = vmatpush1.msra.mxu0 0.0
    %642 = vmatprep.subr.mxu0 0.0
    %643 = vmatpush1.msra.mxu0 0.0
    %644 = vmatprep.subr.mxu0 0.0
    %645 = vmatpush1.msra.mxu0 0.0
    %646 = vmatprep.subr.mxu0 0.0
    %647 = vmatpush1.msra.mxu0 0.0
    %648 = vmatprep.subr.mxu0 0.0
    %649 = vmatpush1.msra.mxu0 0.0
    %650 = vmatprep.subr.mxu0 0.0
    %651 = vmatpush1.msra.mxu0 0.0
    %652 = vmatprep.subr.mxu0 0.0
    %653 = vmatpush1.msra.mxu0 0.0
    %654 = vmatprep.subr.mxu0 0.0
    %655 = vmatpush1.msra.mxu0 0.0
    %656 = vmatprep.subr.mxu0 0.0
    %657 = vmatpush1.msra.mxu0 0.0
    %658 = vmatprep.subr.mxu0 0.0
    %659 = vmatpush1.msra.mxu0 0.0
    %660 = vmatprep.subr.mxu0 0.0
    %661 = vmatpush1.msra.mxu0 0.0
    %662 = vmatprep.subr.mxu0 0.0
    %663 = vmatpush1.msra.mxu0 0.0
    %664 = vmatprep.subr.mxu0 0.0
    %665 = vmatpush1.msra.mxu0 0.0
    %666 = vmatprep.mubr.f32.mxu0 0.0
    %667 = vmatmul.mubr.f32.gmra.mrb[0].mxu0 %v37
    %v668 = vpop.f32.mrb[0].mxu0
    %v669 = vadd.f32 0.0, %v668
    %v670 = vpop.f32.mrb[0].mxu0
    %671 = vmatprep.mubr.f32.mxu0 0.0
    %672 = vmatmul.mubr.f32.gmra.mrb[0].mxu0 %v40
    %v673 = vpop.f32.mrb[0].mxu0
    %v674 = vadd.f32 0.0, %v673
    %v675 = vpop.f32.mrb[0].mxu0
    %676 = vdwg.mxu0
    %s677 = scalar_lea.vmem %s3, 32
    %v678 = vld [vmem:[%s677] sm:$0xff]
    %v679 = vld [vmem:[%s677 + $0x8] sm:$0xff]
    %v680 = vld [vmem:[%s677 + $0x10] sm:$0xff]
    %v681 = vld [vmem:[%s677 + $0x18] sm:$0xff]
    %682 = vmatprep.subr.mxu0 0.0
    %683 = vmatpush1.msra.mxu0 %v678
    %684 = vmatprep.subr.mxu0 0.0
    %685 = vmatpush1.msra.mxu0 %v679
    %686 = vmatprep.subr.mxu0 0.0
    %687 = vmatpush1.msra.mxu0 %v680
    %688 = vmatprep.subr.mxu0 0.0
    %689 = vmatpush1.msra.mxu0 %v681
    %690 = vmatprep.subr.mxu0 0.0
    %691 = vmatpush1.msra.mxu0 0.0
    %692 = vmatprep.subr.mxu0 0.0
    %693 = vmatpush1.msra.mxu0 0.0
    %694 = vmatprep.subr.mxu0 0.0
    %695 = vmatpush1.msra.mxu0 0.0
    %696 = vmatprep.subr.mxu0 0.0
    %697 = vmatpush1.msra.mxu0 0.0
    %698 = vmatprep.subr.mxu0 0.0
    %699 = vmatpush1.msra.mxu0 0.0
    %700 = vmatprep.subr.mxu0 0.0
    %701 = vmatpush1.msra.mxu0 0.0
    %702 = vmatprep.subr.mxu0 0.0
    %703 = vmatpush1.msra.mxu0 0.0
    %704 = vmatprep.subr.mxu0 0.0
    %705 = vmatpush1.msra.mxu0 0.0
    %706 = vmatprep.subr.mxu0 0.0
    %707 = vmatpush1.msra.mxu0 0.0
    %708 = vmatprep.subr.mxu0 0.0
    %709 = vmatpush1.msra.mxu0 0.0
    %710 = vmatprep.subr.mxu0 0.0
    %711 = vmatpush1.msra.mxu0 0.0
    %712 = vmatprep.subr.mxu0 0.0
    %713 = vmatpush1.msra.mxu0 0.0
    %714 = vmatprep.subr.mxu0 0.0
    %715 = vmatpush1.msra.mxu0 0.0
    %716 = vmatprep.subr.mxu0 0.0
    %717 = vmatpush1.msra.mxu0 0.0
    %718 = vmatprep.subr.mxu0 0.0
    %719 = vmatpush1.msra.mxu0 0.0
    %720 = vmatprep.subr.mxu0 0.0
    %721 = vmatpush1.msra.mxu0 0.0
    %722 = vmatprep.subr.mxu0 0.0
    %723 = vmatpush1.msra.mxu0 0.0
    %724 = vmatprep.subr.mxu0 0.0
    %725 = vmatpush1.msra.mxu0 0.0
    %726 = vmatprep.subr.mxu0 0.0
    %727 = vmatpush1.msra.mxu0 0.0
    %728 = vmatprep.subr.mxu0 0.0
    %729 = vmatpush1.msra.mxu0 0.0
    %730 = vmatprep.subr.mxu0 0.0
    %731 = vmatpush1.msra.mxu0 0.0
    %732 = vmatprep.subr.mxu0 0.0
    %733 = vmatpush1.msra.mxu0 0.0
    %734 = vmatprep.subr.mxu0 0.0
    %735 = vmatpush1.msra.mxu0 0.0
    %736 = vmatprep.subr.mxu0 0.0
    %737 = vmatpush1.msra.mxu0 0.0
    %738 = vmatprep.subr.mxu0 0.0
    %739 = vmatpush1.msra.mxu0 0.0
    %740 = vmatprep.subr.mxu0 0.0
    %741 = vmatpush1.msra.mxu0 0.0
    %742 = vmatprep.subr.mxu0 0.0
    %743 = vmatpush1.msra.mxu0 0.0
    %744 = vmatprep.subr.mxu0 0.0
    %745 = vmatpush1.msra.mxu0 0.0
    %746 = vmatprep.mubr.f32.mxu0 0.0
    %747 = vmatmul.mubr.f32.gmra.mrb[0].mxu0 %v37
    %v748 = vpop.f32.mrb[0].mxu0
    %v749 = vadd.f32 0.0, %v748
    %v750 = vpop.f32.mrb[0].mxu0
    %751 = vmatprep.mubr.f32.mxu0 0.0
    %752 = vmatmul.mubr.f32.gmra.mrb[0].mxu0 %v40
    %v753 = vpop.f32.mrb[0].mxu0
    %v754 = vadd.f32 0.0, %v753
    %v755 = vpop.f32.mrb[0].mxu0
    %756 = vdwg.mxu0
    %s757 = scalar_lea.vmem %s4, 32
    %v758 = vld [vmem:[%s757] sm:$0xff]
    %v759 = vld [vmem:[%s757 + $0x8] sm:$0xff]
    %v760 = vld [vmem:[%s757 + $0x10] sm:$0xff]
    %v761 = vld [vmem:[%s757 + $0x18] sm:$0xff]
    %762 = vmatprep.subr.mxu0 0.0
    %763 = vmatpush1.msra.mxu0 %v758
    %764 = vmatprep.subr.mxu0 0.0
    %765 = vmatpush1.msra.mxu0 %v759
    %766 = vmatprep.subr.mxu0 0.0
    %767 = vmatpush1.msra.mxu0 %v760
    %768 = vmatprep.subr.mxu0 0.0
    %769 = vmatpush1.msra.mxu0 %v761
    %770 = vmatprep.subr.mxu0 0.0
    %771 = vmatpush1.msra.mxu0 0.0
    %772 = vmatprep.subr.mxu0 0.0
    %773 = vmatpush1.msra.mxu0 0.0
    %774 = vmatprep.subr.mxu0 0.0
    %775 = vmatpush1.msra.mxu0 0.0
    %776 = vmatprep.subr.mxu0 0.0
    %777 = vmatpush1.msra.mxu0 0.0
    %778 = vmatprep.subr.mxu0 0.0
    %779 = vmatpush1.msra.mxu0 0.0
    %780 = vmatprep.subr.mxu0 0.0
    %781 = vmatpush1.msra.mxu0 0.0
    %782 = vmatprep.subr.mxu0 0.0
    %783 = vmatpush1.msra.mxu0 0.0
    %784 = vmatprep.subr.mxu0 0.0
    %785 = vmatpush1.msra.mxu0 0.0
    %786 = vmatprep.subr.mxu0 0.0
    %787 = vmatpush1.msra.mxu0 0.0
    %788 = vmatprep.subr.mxu0 0.0
    %789 = vmatpush1.msra.mxu0 0.0
    %790 = vmatprep.subr.mxu0 0.0
    %791 = vmatpush1.msra.mxu0 0.0
    %792 = vmatprep.subr.mxu0 0.0
    %793 = vmatpush1.msra.mxu0 0.0
    %794 = vmatprep.subr.mxu0 0.0
    %795 = vmatpush1.msra.mxu0 0.0
    %796 = vmatprep.subr.mxu0 0.0
    %797 = vmatpush1.msra.mxu0 0.0
    %798 = vmatprep.subr.mxu0 0.0
    %799 = vmatpush1.msra.mxu0 0.0
    %800 = vmatprep.subr.mxu0 0.0
    %801 = vmatpush1.msra.mxu0 0.0
    %802 = vmatprep.subr.mxu0 0.0
    %803 = vmatpush1.msra.mxu0 0.0
    %804 = vmatprep.subr.mxu0 0.0
    %805 = vmatpush1.msra.mxu0 0.0
    %806 = vmatprep.subr.mxu0 0.0
    %807 = vmatpush1.msra.mxu0 0.0
    %808 = vmatprep.subr.mxu0 0.0
    %809 = vmatpush1.msra.mxu0 0.0
    %810 = vmatprep.subr.mxu0 0.0
    %811 = vmatpush1.msra.mxu0 0.0
    %812 = vmatprep.subr.mxu0 0.0
    %813 = vmatpush1.msra.mxu0 0.0
    %814 = vmatprep.subr.mxu0 0.0
    %815 = vmatpush1.msra.mxu0 0.0
    %816 = vmatprep.subr.mxu0 0.0
    %817 = vmatpush1.msra.mxu0 0.0
    %818 = vmatprep.subr.mxu0 0.0
    %819 = vmatpush1.msra.mxu0 0.0
    %820 = vmatprep.subr.mxu0 0.0
    %821 = vmatpush1.msra.mxu0 0.0
    %822 = vmatprep.subr.mxu0 0.0
    %823 = vmatpush1.msra.mxu0 0.0
    %824 = vmatprep.subr.mxu0 0.0
    %825 = vmatpush1.msra.mxu0 0.0
    %826 = vmatprep.mubr.f32.mxu0 0.0
    %827 = vmatmul.mubr.f32.gmra.mrb[0].mxu0 %v37
    %v828 = vpop.f32.mrb[0].mxu0
    %v829 = vadd.f32 0.0, %v828
    %v830 = vpop.f32.mrb[0].mxu0
    %831 = vmatprep.mubr.f32.mxu0 0.0
    %832 = vmatmul.mubr.f32.gmra.mrb[0].mxu0 %v40
    %v833 = vpop.f32.mrb[0].mxu0
    %v834 = vadd.f32 0.0, %v833
    %v835 = vpop.f32.mrb[0].mxu0
    %836 = vdwg.mxu0
    %v838 = vsel %vm275, %v669, 0
    %v841 = vsel %vm275, %v749, 0
    %843 = vmatprep.subr.mxu0 0.0
    %844 = vmatpush1.xpose.msra.mxu0 %v841
    %845 = vmatprep.subr.mxu0 0.0
    %846 = vmatpush1.xpose.msra.mxu0 0.0
    %847 = vmatprep.subr.mxu0 0.0
    %848 = vmatpush1.xpose.msra.mxu0 0.0
    %849 = vmatprep.subr.mxu0 0.0
    %850 = vmatpush1.xpose.msra.mxu0 0.0
    %851 = vmatprep.subr.mxu0 0.0
    %852 = vmatpush1.xpose.msra.mxu0 0.0
    %853 = vmatprep.subr.mxu0 0.0
    %854 = vmatpush1.xpose.msra.mxu0 0.0
    %855 = vmatprep.subr.mxu0 0.0
    %856 = vmatpush1.xpose.msra.mxu0 0.0
    %857 = vmatprep.subr.mxu0 0.0
    %858 = vmatpush1.xpose.msra.mxu0 0.0
    %859 = vmatprep.subr.mxu0 0.0
    %860 = vmatpush1.xpose.msra.mxu0 0.0
    %861 = vmatprep.subr.mxu0 0.0
    %862 = vmatpush1.xpose.msra.mxu0 0.0
    %863 = vmatprep.subr.mxu0 0.0
    %864 = vmatpush1.xpose.msra.mxu0 0.0
    %865 = vmatprep.subr.mxu0 0.0
    %866 = vmatpush1.xpose.msra.mxu0 0.0
    %867 = vmatprep.subr.mxu0 0.0
    %868 = vmatpush1.xpose.msra.mxu0 0.0
    %869 = vmatprep.subr.mxu0 0.0
    %870 = vmatpush1.xpose.msra.mxu0 0.0
    %871 = vmatprep.subr.mxu0 0.0
    %872 = vmatpush1.xpose.msra.mxu0 0.0
    %873 = vmatprep.subr.mxu0 0.0
    %874 = vmatpush1.xpose.msra.mxu0 0.0
    %875 = vmatprep.subr.mxu0 0.0
    %876 = vmatpush1.xpose.msra.mxu0 0.0
    %877 = vmatprep.subr.mxu0 0.0
    %878 = vmatpush1.xpose.msra.mxu0 0.0
    %879 = vmatprep.subr.mxu0 0.0
    %880 = vmatpush1.xpose.msra.mxu0 0.0
    %881 = vmatprep.subr.mxu0 0.0
    %882 = vmatpush1.xpose.msra.mxu0 0.0
    %883 = vmatprep.subr.mxu0 0.0
    %884 = vmatpush1.xpose.msra.mxu0 0.0
    %885 = vmatprep.subr.mxu0 0.0
    %886 = vmatpush1.xpose.msra.mxu0 0.0
    %887 = vmatprep.subr.mxu0 0.0
    %888 = vmatpush1.xpose.msra.mxu0 0.0
    %889 = vmatprep.subr.mxu0 0.0
    %890 = vmatpush1.xpose.msra.mxu0 0.0
    %891 = vmatprep.subr.mxu0 0.0
    %892 = vmatpush1.xpose.msra.mxu0 0.0
    %893 = vmatprep.subr.mxu0 0.0
    %894 = vmatpush1.xpose.msra.mxu0 0.0
    %895 = vmatprep.subr.mxu0 0.0
    %896 = vmatpush1.xpose.msra.mxu0 0.0
    %897 = vmatprep.subr.mxu0 0.0
    %898 = vmatpush1.xpose.msra.mxu0 0.0
    %899 = vmatprep.subr.mxu0 0.0
    %900 = vmatpush1.xpose.msra.mxu0 0.0
    %901 = vmatprep.subr.mxu0 0.0
    %902 = vmatpush1.xpose.msra.mxu0 0.0
    %903 = vmatprep.subr.mxu0 0.0
    %904 = vmatpush1.xpose.msra.mxu0 0.0
    %905 = vmatprep.subr.mxu0 0.0
    %906 = vmatpush1.xpose.msra.mxu0 0.0
    %907 = vmatprep.mubr.f32.mxu0 0.0
    %908 = vmatmul.mubr.f32.gmra.mrb[0].mxu0 %v838
    %v909 = vpop.f32.mrb[0].mxu0
    %v910 = vadd.f32 %v27, %v909
    %v911 = vpop.f32.mrb[0].mxu0
    %912 = vdwg.mxu0
    %v914 = vsel %vm275, %v674, 0
    %v917 = vsel %vm275, %v754, 0
    %919 = vmatprep.subr.mxu0 0.0
    %920 = vmatpush1.xpose.msra.mxu0 %v917
    %921 = vmatprep.subr.mxu0 0.0
    %922 = vmatpush1.xpose.msra.mxu0 0.0
    %923 = vmatprep.subr.mxu0 0.0
    %924 = vmatpush1.xpose.msra.mxu0 0.0
    %925 = vmatprep.subr.mxu0 0.0
    %926 = vmatpush1.xpose.msra.mxu0 0.0
    %927 = vmatprep.subr.mxu0 0.0
    %928 = vmatpush1.xpose.msra.mxu0 0.0
    %929 = vmatprep.subr.mxu0 0.0
    %930 = vmatpush1.xpose.msra.mxu0 0.0
    %931 = vmatprep.subr.mxu0 0.0
    %932 = vmatpush1.xpose.msra.mxu0 0.0
    %933 = vmatprep.subr.mxu0 0.0
    %934 = vmatpush1.xpose.msra.mxu0 0.0
    %935 = vmatprep.subr.mxu0 0.0
    %936 = vmatpush1.xpose.msra.mxu0 0.0
    %937 = vmatprep.subr.mxu0 0.0
    %938 = vmatpush1.xpose.msra.mxu0 0.0
    %939 = vmatprep.subr.mxu0 0.0
    %940 = vmatpush1.xpose.msra.mxu0 0.0
    %941 = vmatprep.subr.mxu0 0.0
    %942 = vmatpush1.xpose.msra.mxu0 0.0
    %943 = vmatprep.subr.mxu0 0.0
    %944 = vmatpush1.xpose.msra.mxu0 0.0
    %945 = vmatprep.subr.mxu0 0.0
    %946 = vmatpush1.xpose.msra.mxu0 0.0
    %947 = vmatprep.subr.mxu0 0.0
    %948 = vmatpush1.xpose.msra.mxu0 0.0
    %949 = vmatprep.subr.mxu0 0.0
    %950 = vmatpush1.xpose.msra.mxu0 0.0
    %951 = vmatprep.subr.mxu0 0.0
    %952 = vmatpush1.xpose.msra.mxu0 0.0
    %953 = vmatprep.subr.mxu0 0.0
    %954 = vmatpush1.xpose.msra.mxu0 0.0
    %955 = vmatprep.subr.mxu0 0.0
    %956 = vmatpush1.xpose.msra.mxu0 0.0
    %957 = vmatprep.subr.mxu0 0.0
    %958 = vmatpush1.xpose.msra.mxu0 0.0
    %959 = vmatprep.subr.mxu0 0.0
    %960 = vmatpush1.xpose.msra.mxu0 0.0
    %961 = vmatprep.subr.mxu0 0.0
    %962 = vmatpush1.xpose.msra.mxu0 0.0
    %963 = vmatprep.subr.mxu0 0.0
    %964 = vmatpush1.xpose.msra.mxu0 0.0
    %965 = vmatprep.subr.mxu0 0.0
    %966 = vmatpush1.xpose.msra.mxu0 0.0
    %967 = vmatprep.subr.mxu0 0.0
    %968 = vmatpush1.xpose.msra.mxu0 0.0
    %969 = vmatprep.subr.mxu0 0.0
    %970 = vmatpush1.xpose.msra.mxu0 0.0
    %971 = vmatprep.subr.mxu0 0.0
    %972 = vmatpush1.xpose.msra.mxu0 0.0
    %973 = vmatprep.subr.mxu0 0.0
    %974 = vmatpush1.xpose.msra.mxu0 0.0
    %975 = vmatprep.subr.mxu0 0.0
    %976 = vmatpush1.xpose.msra.mxu0 0.0
    %977 = vmatprep.subr.mxu0 0.0
    %978 = vmatpush1.xpose.msra.mxu0 0.0
    %979 = vmatprep.subr.mxu0 0.0
    %980 = vmatpush1.xpose.msra.mxu0 0.0
    %981 = vmatprep.subr.mxu0 0.0
    %982 = vmatpush1.xpose.msra.mxu0 0.0
    %983 = vmatprep.mubr.f32.mxu0 0.0
    %984 = vmatmul.mubr.f32.gmra.mrb[0].mxu0 %v914
    %v985 = vpop.f32.mrb[0].mxu0
    %v986 = vadd.f32 %v27, %v985
    %v987 = vpop.f32.mrb[0].mxu0
    %988 = vdwg.mxu0
    %v989 = vsel %vm275, %v910, -inf
    %990 = vmax.xlane.f32.xlu0 %v989
    %v991 = vpop.xlane.xlu0 %990
    %v992 = vsel %vm275, %v986, -inf
    %993 = vmax.xlane.f32.xlu0 %v992
    %v994 = vpop.xlane.xlu0 %993
    %v995 = vsub.f32 %v910, %v991
    %v996 = vsub.f32 %v986, %v994
    %v997 = vmul.f32 %v995, 1.442695
    %v998 = vpow.pop %v997
    %v999 = vmul.f32 %v996, 1.442695
    %v1000 = vpow.pop %v999
    %v1001 = vsel %vm275, %v998, 0.0
    %1002 = vadd.xlane.f32.xlu0 %v1001
    %v1003 = vpop.xlane.xlu0 %1002
    %v1004 = vsel %vm275, %v1000, 0.0
    %1005 = vadd.xlane.f32.xlu0 %v1004
    %v1006 = vpop.xlane.xlu0 %1005
    %v1007 = vrcp.pop %v1003
    %v1008 = vrcp.pop %v1006
    %v1009 = vmul.f32 %v998, %v1007
    %v1010 = vmul.f32 %v1000, %v1008
    %v1012 = vsel %vm275, %v1009, 0
    %1014 = vmatprep.subr.mxu0 0.0
    %1015 = vmatpush1.msra.mxu0 %v829
    %1016 = vmatprep.subr.mxu0 0.0
    %1017 = vmatpush1.msra.mxu0 0.0
    %1018 = vmatprep.subr.mxu0 0.0
    %1019 = vmatpush1.msra.mxu0 0.0
    %1020 = vmatprep.subr.mxu0 0.0
    %1021 = vmatpush1.msra.mxu0 0.0
    %1022 = vmatprep.subr.mxu0 0.0
    %1023 = vmatpush1.msra.mxu0 0.0
    %1024 = vmatprep.subr.mxu0 0.0
    %1025 = vmatpush1.msra.mxu0 0.0
    %1026 = vmatprep.subr.mxu0 0.0
    %1027 = vmatpush1.msra.mxu0 0.0
    %1028 = vmatprep.subr.mxu0 0.0
    %1029 = vmatpush1.msra.mxu0 0.0
    %1030 = vmatprep.subr.mxu0 0.0
    %1031 = vmatpush1.msra.mxu0 0.0
    %1032 = vmatprep.subr.mxu0 0.0
    %1033 = vmatpush1.msra.mxu0 0.0
    %1034 = vmatprep.subr.mxu0 0.0
    %1035 = vmatpush1.msra.mxu0 0.0
    %1036 = vmatprep.subr.mxu0 0.0
    %1037 = vmatpush1.msra.mxu0 0.0
    %1038 = vmatprep.subr.mxu0 0.0
    %1039 = vmatpush1.msra.mxu0 0.0
    %1040 = vmatprep.subr.mxu0 0.0
    %1041 = vmatpush1.msra.mxu0 0.0
    %1042 = vmatprep.subr.mxu0 0.0
    %1043 = vmatpush1.msra.mxu0 0.0
    %1044 = vmatprep.subr.mxu0 0.0
    %1045 = vmatpush1.msra.mxu0 0.0
    %1046 = vmatprep.subr.mxu0 0.0
    %1047 = vmatpush1.msra.mxu0 0.0
    %1048 = vmatprep.subr.mxu0 0.0
    %1049 = vmatpush1.msra.mxu0 0.0
    %1050 = vmatprep.subr.mxu0 0.0
    %1051 = vmatpush1.msra.mxu0 0.0
    %1052 = vmatprep.subr.mxu0 0.0
    %1053 = vmatpush1.msra.mxu0 0.0
    %1054 = vmatprep.subr.mxu0 0.0
    %1055 = vmatpush1.msra.mxu0 0.0
    %1056 = vmatprep.subr.mxu0 0.0
    %1057 = vmatpush1.msra.mxu0 0.0
    %1058 = vmatprep.subr.mxu0 0.0
    %1059 = vmatpush1.msra.mxu0 0.0
    %1060 = vmatprep.subr.mxu0 0.0
    %1061 = vmatpush1.msra.mxu0 0.0
    %1062 = vmatprep.subr.mxu0 0.0
    %1063 = vmatpush1.msra.mxu0 0.0
    %1064 = vmatprep.subr.mxu0 0.0
    %1065 = vmatpush1.msra.mxu0 0.0
    %1066 = vmatprep.subr.mxu0 0.0
    %1067 = vmatpush1.msra.mxu0 0.0
    %1068 = vmatprep.subr.mxu0 0.0
    %1069 = vmatpush1.msra.mxu0 0.0
    %1070 = vmatprep.subr.mxu0 0.0
    %1071 = vmatpush1.msra.mxu0 0.0
    %1072 = vmatprep.subr.mxu0 0.0
    %1073 = vmatpush1.msra.mxu0 0.0
    %1074 = vmatprep.subr.mxu0 0.0
    %1075 = vmatpush1.msra.mxu0 0.0
    %1076 = vmatprep.subr.mxu0 0.0
    %1077 = vmatpush1.msra.mxu0 0.0
    %1078 = vmatprep.mubr.f32.mxu0 0.0
    %1079 = vmatmul.mubr.f32.gmra.mrb[0].mxu0 %v1012
    %v1080 = vpop.f32.mrb[0].mxu0
    %v1081 = vadd.f32 0.0, %v1080
    %v1082 = vpop.f32.mrb[0].mxu0
    %1083 = vdwg.mxu0
    %v1085 = vsel %vm275, %v1010, 0
    %1087 = vmatprep.subr.mxu0 0.0
    %1088 = vmatpush1.msra.mxu0 %v834
    %1089 = vmatprep.subr.mxu0 0.0
    %1090 = vmatpush1.msra.mxu0 0.0
    %1091 = vmatprep.subr.mxu0 0.0
    %1092 = vmatpush1.msra.mxu0 0.0
    %1093 = vmatprep.subr.mxu0 0.0
    %1094 = vmatpush1.msra.mxu0 0.0
    %1095 = vmatprep.subr.mxu0 0.0
    %1096 = vmatpush1.msra.mxu0 0.0
    %1097 = vmatprep.subr.mxu0 0.0
    %1098 = vmatpush1.msra.mxu0 0.0
    %1099 = vmatprep.subr.mxu0 0.0
    %1100 = vmatpush1.msra.mxu0 0.0
    %1101 = vmatprep.subr.mxu0 0.0
    %1102 = vmatpush1.msra.mxu0 0.0
    %1103 = vmatprep.subr.mxu0 0.0
    %1104 = vmatpush1.msra.mxu0 0.0
    %1105 = vmatprep.subr.mxu0 0.0
    %1106 = vmatpush1.msra.mxu0 0.0
    %1107 = vmatprep.subr.mxu0 0.0
    %1108 = vmatpush1.msra.mxu0 0.0
    %1109 = vmatprep.subr.mxu0 0.0
    %1110 = vmatpush1.msra.mxu0 0.0
    %1111 = vmatprep.subr.mxu0 0.0
    %1112 = vmatpush1.msra.mxu0 0.0
    %1113 = vmatprep.subr.mxu0 0.0
    %1114 = vmatpush1.msra.mxu0 0.0
    %1115 = vmatprep.subr.mxu0 0.0
    %1116 = vmatpush1.msra.mxu0 0.0
    %1117 = vmatprep.subr.mxu0 0.0
    %1118 = vmatpush1.msra.mxu0 0.0
    %1119 = vmatprep.subr.mxu0 0.0
    %1120 = vmatpush1.msra.mxu0 0.0
    %1121 = vmatprep.subr.mxu0 0.0
    %1122 = vmatpush1.msra.mxu0 0.0
    %1123 = vmatprep.subr.mxu0 0.0
    %1124 = vmatpush1.msra.mxu0 0.0
    %1125 = vmatprep.subr.mxu0 0.0
    %1126 = vmatpush1.msra.mxu0 0.0
    %1127 = vmatprep.subr.mxu0 0.0
    %1128 = vmatpush1.msra.mxu0 0.0
    %1129 = vmatprep.subr.mxu0 0.0
    %1130 = vmatpush1.msra.mxu0 0.0
    %1131 = vmatprep.subr.mxu0 0.0
    %1132 = vmatpush1.msra.mxu0 0.0
    %1133 = vmatprep.subr.mxu0 0.0
    %1134 = vmatpush1.msra.mxu0 0.0
    %1135 = vmatprep.subr.mxu0 0.0
    %1136 = vmatpush1.msra.mxu0 0.0
    %1137 = vmatprep.subr.mxu0 0.0
    %1138 = vmatpush1.msra.mxu0 0.0
    %1139 = vmatprep.subr.mxu0 0.0
    %1140 = vmatpush1.msra.mxu0 0.0
    %1141 = vmatprep.subr.mxu0 0.0
    %1142 = vmatpush1.msra.mxu0 0.0
    %1143 = vmatprep.subr.mxu0 0.0
    %1144 = vmatpush1.msra.mxu0 0.0
    %1145 = vmatprep.subr.mxu0 0.0
    %1146 = vmatpush1.msra.mxu0 0.0
    %1147 = vmatprep.subr.mxu0 0.0
    %1148 = vmatpush1.msra.mxu0 0.0
    %1149 = vmatprep.subr.mxu0 0.0
    %1150 = vmatpush1.msra.mxu0 0.0
    %1151 = vmatprep.mubr.f32.mxu0 0.0
    %1152 = vmatmul.mubr.f32.gmra.mrb[0].mxu0 %v1085
    %v1153 = vpop.f32.mrb[0].mxu0
    %v1154 = vadd.f32 0.0, %v1153
    %v1155 = vpop.f32.mrb[0].mxu0
    %1156 = vdwg.mxu0
    %s1157 = scalar_lea.vmem %s5, 8
    %v1158 = vld [vmem:[%s1157] sm:$0xff]
    %v1160 = vsel %vm275, %v1081, 0
    %v1163 = vsel %vm275, %v1154, 0
    %1165 = vmatprep.subr.mxu0 0.0
    %1166 = vmatpush1.msra.mxu0 %v1158
    %1167 = vmatprep.subr.mxu0 0.0
    %1168 = vmatpush1.msra.mxu0 0.0
    %1169 = vmatprep.subr.mxu0 0.0
    %1170 = vmatpush1.msra.mxu0 0.0
    %1171 = vmatprep.subr.mxu0 0.0
    %1172 = vmatpush1.msra.mxu0 0.0
    %1173 = vmatprep.subr.mxu0 0.0
    %1174 = vmatpush1.msra.mxu0 0.0
    %1175 = vmatprep.subr.mxu0 0.0
    %1176 = vmatpush1.msra.mxu0 0.0
    %1177 = vmatprep.subr.mxu0 0.0
    %1178 = vmatpush1.msra.mxu0 0.0
    %1179 = vmatprep.subr.mxu0 0.0
    %1180 = vmatpush1.msra.mxu0 0.0
    %1181 = vmatprep.subr.mxu0 0.0
    %1182 = vmatpush1.msra.mxu0 0.0
    %1183 = vmatprep.subr.mxu0 0.0
    %1184 = vmatpush1.msra.mxu0 0.0
    %1185 = vmatprep.subr.mxu0 0.0
    %1186 = vmatpush1.msra.mxu0 0.0
    %1187 = vmatprep.subr.mxu0 0.0
    %1188 = vmatpush1.msra.mxu0 0.0
    %1189 = vmatprep.subr.mxu0 0.0
    %1190 = vmatpush1.msra.mxu0 0.0
    %1191 = vmatprep.subr.mxu0 0.0
    %1192 = vmatpush1.msra.mxu0 0.0
    %1193 = vmatprep.subr.mxu0 0.0
    %1194 = vmatpush1.msra.mxu0 0.0
    %1195 = vmatprep.subr.mxu0 0.0
    %1196 = vmatpush1.msra.mxu0 0.0
    %1197 = vmatprep.subr.mxu0 0.0
    %1198 = vmatpush1.msra.mxu0 0.0
    %1199 = vmatprep.subr.mxu0 0.0
    %1200 = vmatpush1.msra.mxu0 0.0
    %1201 = vmatprep.subr.mxu0 0.0
    %1202 = vmatpush1.msra.mxu0 0.0
    %1203 = vmatprep.subr.mxu0 0.0
    %1204 = vmatpush1.msra.mxu0 0.0
    %1205 = vmatprep.subr.mxu0 0.0
    %1206 = vmatpush1.msra.mxu0 0.0
    %1207 = vmatprep.subr.mxu0 0.0
    %1208 = vmatpush1.msra.mxu0 0.0
    %1209 = vmatprep.subr.mxu0 0.0
    %1210 = vmatpush1.msra.mxu0 0.0
    %1211 = vmatprep.subr.mxu0 0.0
    %1212 = vmatpush1.msra.mxu0 0.0
    %1213 = vmatprep.subr.mxu0 0.0
    %1214 = vmatpush1.msra.mxu0 0.0
    %1215 = vmatprep.subr.mxu0 0.0
    %1216 = vmatpush1.msra.mxu0 0.0
    %1217 = vmatprep.subr.mxu0 0.0
    %1218 = vmatpush1.msra.mxu0 0.0
    %1219 = vmatprep.subr.mxu0 0.0
    %1220 = vmatpush1.msra.mxu0 0.0
    %1221 = vmatprep.subr.mxu0 0.0
    %1222 = vmatpush1.msra.mxu0 0.0
    %1223 = vmatprep.subr.mxu0 0.0
    %1224 = vmatpush1.msra.mxu0 0.0
    %1225 = vmatprep.subr.mxu0 0.0
    %1226 = vmatpush1.msra.mxu0 0.0
    %1227 = vmatprep.subr.mxu0 0.0
    %1228 = vmatpush1.msra.mxu0 0.0
    %1229 = vmatprep.mubr.f32.mxu0 0.0
    %1230 = vmatmul.mubr.f32.gmra.mrb[0].mxu0 %v1160
    %v1231 = vpop.f32.mrb[0].mxu0
    %v1232 = vadd.f32 0.0, %v1231
    %v1233 = vpop.f32.mrb[0].mxu0
    %1234 = vmatprep.mubr.f32.mxu0 0.0
    %1235 = vmatmul.mubr.f32.gmra.mrb[0].mxu0 %v1163
    %v1236 = vpop.f32.mrb[0].mxu0
    %v1237 = vadd.f32 0.0, %v1236
    %v1238 = vpop.f32.mrb[0].mxu0
    %1239 = vdwg.mxu0
    %v1241 = vsel %vm275, %v520, 0
    %v1244 = vsel %vm275, %v593, 0
    %1246 = vmatprep.subr.mxu0 0.0
    %1247 = vmatpush1.msra.mxu0 %v596
    %1248 = vmatprep.subr.mxu0 0.0
    %1249 = vmatpush1.msra.mxu0 0.0
    %1250 = vmatprep.subr.mxu0 0.0
    %1251 = vmatpush1.msra.mxu0 0.0
    %1252 = vmatprep.subr.mxu0 0.0
    %1253 = vmatpush1.msra.mxu0 0.0
    %1254 = vmatprep.subr.mxu0 0.0
    %1255 = vmatpush1.msra.mxu0 0.0
    %1256 = vmatprep.subr.mxu0 0.0
    %1257 = vmatpush1.msra.mxu0 0.0
    %1258 = vmatprep.subr.mxu0 0.0
    %1259 = vmatpush1.msra.mxu0 0.0
    %1260 = vmatprep.subr.mxu0 0.0
    %1261 = vmatpush1.msra.mxu0 0.0
    %1262 = vmatprep.subr.mxu0 0.0
    %1263 = vmatpush1.msra.mxu0 0.0
    %1264 = vmatprep.subr.mxu0 0.0
    %1265 = vmatpush1.msra.mxu0 0.0
    %1266 = vmatprep.subr.mxu0 0.0
    %1267 = vmatpush1.msra.mxu0 0.0
    %1268 = vmatprep.subr.mxu0 0.0
    %1269 = vmatpush1.msra.mxu0 0.0
    %1270 = vmatprep.subr.mxu0 0.0
    %1271 = vmatpush1.msra.mxu0 0.0
    %1272 = vmatprep.subr.mxu0 0.0
    %1273 = vmatpush1.msra.mxu0 0.0
    %1274 = vmatprep.subr.mxu0 0.0
    %1275 = vmatpush1.msra.mxu0 0.0
    %1276 = vmatprep.subr.mxu0 0.0
    %1277 = vmatpush1.msra.mxu0 0.0
    %1278 = vmatprep.subr.mxu0 0.0
    %1279 = vmatpush1.msra.mxu0 0.0
    %1280 = vmatprep.subr.mxu0 0.0
    %1281 = vmatpush1.msra.mxu0 0.0
    %1282 = vmatprep.subr.mxu0 0.0
    %1283 = vmatpush1.msra.mxu0 0.0
    %1284 = vmatprep.subr.mxu0 0.0
    %1285 = vmatpush1.msra.mxu0 0.0
    %1286 = vmatprep.subr.mxu0 0.0
    %1287 = vmatpush1.msra.mxu0 0.0
    %1288 = vmatprep.subr.mxu0 0.0
    %1289 = vmatpush1.msra.mxu0 0.0
    %1290 = vmatprep.subr.mxu0 0.0
    %1291 = vmatpush1.msra.mxu0 0.0
    %1292 = vmatprep.subr.mxu0 0.0
    %1293 = vmatpush1.msra.mxu0 0.0
    %1294 = vmatprep.subr.mxu0 0.0
    %1295 = vmatpush1.msra.mxu0 0.0
    %1296 = vmatprep.subr.mxu0 0.0
    %1297 = vmatpush1.msra.mxu0 0.0
    %1298 = vmatprep.subr.mxu0 0.0
    %1299 = vmatpush1.msra.mxu0 0.0
    %1300 = vmatprep.subr.mxu0 0.0
    %1301 = vmatpush1.msra.mxu0 0.0
    %1302 = vmatprep.subr.mxu0 0.0
    %1303 = vmatpush1.msra.mxu0 0.0
    %1304 = vmatprep.subr.mxu0 0.0
    %1305 = vmatpush1.msra.mxu0 0.0
    %1306 = vmatprep.subr.mxu0 0.0
    %1307 = vmatpush1.msra.mxu0 0.0
    %1308 = vmatprep.subr.mxu0 0.0
    %1309 = vmatpush1.msra.mxu0 0.0
    %1310 = vmatprep.mubr.f32.mxu0 0.0
    %1311 = vmatmul.mubr.f32.gmra.mrb[0].mxu0 %v1241
    %v1312 = vpop.f32.mrb[0].mxu0
    %v1313 = vadd.f32 %v1232, %v1312
    %v1314 = vpop.f32.mrb[0].mxu0
    %1315 = vmatprep.mubr.f32.mxu0 0.0
    %1316 = vmatmul.mubr.f32.gmra.mrb[0].mxu0 %v1244
    %v1317 = vpop.f32.mrb[0].mxu0
    %v1318 = vadd.f32 %v1237, %v1317
    %v1319 = vpop.f32.mrb[0].mxu0
    %1320 = vdwg.mxu0
    %s1321 = scalar_lea.vmem %s2, 64
    %v1322 = vld [vmem:[%s1321] sm:$0xff]
    %v1323 = vld [vmem:[%s1321 + $0x8] sm:$0xff]
    %v1324 = vld [vmem:[%s1321 + $0x10] sm:$0xff]
    %v1325 = vld [vmem:[%s1321 + $0x18] sm:$0xff]
    %1326 = vmatprep.subr.mxu0 0.0
    %1327 = vmatpush1.msra.mxu0 %v1322
    %1328 = vmatprep.subr.mxu0 0.0
    %1329 = vmatpush1.msra.mxu0 %v1323
    %1330 = vmatprep.subr.mxu0 0.0
    %1331 = vmatpush1.msra.mxu0 %v1324
    %1332 = vmatprep.subr.mxu0 0.0
    %1333 = vmatpush1.msra.mxu0 %v1325
    %1334 = vmatprep.subr.mxu0 0.0
    %1335 = vmatpush1.msra.mxu0 0.0
    %1336 = vmatprep.subr.mxu0 0.0
    %1337 = vmatpush1.msra.mxu0 0.0
    %1338 = vmatprep.subr.mxu0 0.0
    %1339 = vmatpush1.msra.mxu0 0.0
    %1340 = vmatprep.subr.mxu0 0.0
    %1341 = vmatpush1.msra.mxu0 0.0
    %1342 = vmatprep.subr.mxu0 0.0
    %1343 = vmatpush1.msra.mxu0 0.0
    %1344 = vmatprep.subr.mxu0 0.0
    %1345 = vmatpush1.msra.mxu0 0.0
    %1346 = vmatprep.subr.mxu0 0.0
    %1347 = vmatpush1.msra.mxu0 0.0
    %1348 = vmatprep.subr.mxu0 0.0
    %1349 = vmatpush1.msra.mxu0 0.0
    %1350 = vmatprep.subr.mxu0 0.0
    %1351 = vmatpush1.msra.mxu0 0.0
    %1352 = vmatprep.subr.mxu0 0.0
    %1353 = vmatpush1.msra.mxu0 0.0
    %1354 = vmatprep.subr.mxu0 0.0
    %1355 = vmatpush1.msra.mxu0 0.0
    %1356 = vmatprep.subr.mxu0 0.0
    %1357 = vmatpush1.msra.mxu0 0.0
    %1358 = vmatprep.subr.mxu0 0.0
    %1359 = vmatpush1.msra.mxu0 0.0
    %1360 = vmatprep.subr.mxu0 0.0
    %1361 = vmatpush1.msra.mxu0 0.0
    %1362 = vmatprep.subr.mxu0 0.0
    %1363 = vmatpush1.msra.mxu0 0.0
    %1364 = vmatprep.subr.mxu0 0.0
    %1365 = vmatpush1.msra.mxu0 0.0
    %1366 = vmatprep.subr.mxu0 0.0
    %1367 = vmatpush1.msra.mxu0 0.0
    %1368 = vmatprep.subr.mxu0 0.0
    %1369 = vmatpush1.msra.mxu0 0.0
    %1370 = vmatprep.subr.mxu0 0.0
    %1371 = vmatpush1.msra.mxu0 0.0
    %1372 = vmatprep.subr.mxu0 0.0
    %1373 = vmatpush1.msra.mxu0 0.0
    %1374 = vmatprep.subr.mxu0 0.0
    %1375 = vmatpush1.msra.mxu0 0.0
    %1376 = vmatprep.subr.mxu0 0.0
    %1377 = vmatpush1.msra.mxu0 0.0
    %1378 = vmatprep.subr.mxu0 0.0
    %1379 = vmatpush1.msra.mxu0 0.0
    %1380 = vmatprep.subr.mxu0 0.0
    %1381 = vmatpush1.msra.mxu0 0.0
    %1382 = vmatprep.subr.mxu0 0.0
    %1383 = vmatpush1.msra.mxu0 0.0
    %1384 = vmatprep.subr.mxu0 0.0
    %1385 = vmatpush1.msra.mxu0 0.0
    %1386 = vmatprep.subr.mxu0 0.0
    %1387 = vmatpush1.msra.mxu0 0.0
    %1388 = vmatprep.subr.mxu0 0.0
    %1389 = vmatpush1.msra.mxu0 0.0
    %1390 = vmatprep.mubr.f32.mxu0 0.0
    %1391 = vmatmul.mubr.f32.gmra.mrb[0].mxu0 %v37
    %v1392 = vpop.f32.mrb[0].mxu0
    %v1393 = vadd.f32 0.0, %v1392
    %v1394 = vpop.f32.mrb[0].mxu0
    %1395 = vmatprep.mubr.f32.mxu0 0.0
    %1396 = vmatmul.mubr.f32.gmra.mrb[0].mxu0 %v40
    %v1397 = vpop.f32.mrb[0].mxu0
    %v1398 = vadd.f32 0.0, %v1397
    %v1399 = vpop.f32.mrb[0].mxu0
    %1400 = vdwg.mxu0
    %s1401 = scalar_lea.vmem %s3, 64
    %v1402 = vld [vmem:[%s1401] sm:$0xff]
    %v1403 = vld [vmem:[%s1401 + $0x8] sm:$0xff]
    %v1404 = vld [vmem:[%s1401 + $0x10] sm:$0xff]
    %v1405 = vld [vmem:[%s1401 + $0x18] sm:$0xff]
    %1406 = vmatprep.subr.mxu0 0.0
    %1407 = vmatpush1.msra.mxu0 %v1402
    %1408 = vmatprep.subr.mxu0 0.0
    %1409 = vmatpush1.msra.mxu0 %v1403
    %1410 = vmatprep.subr.mxu0 0.0
    %1411 = vmatpush1.msra.mxu0 %v1404
    %1412 = vmatprep.subr.mxu0 0.0
    %1413 = vmatpush1.msra.mxu0 %v1405
    %1414 = vmatprep.subr.mxu0 0.0
    %1415 = vmatpush1.msra.mxu0 0.0
    %1416 = vmatprep.subr.mxu0 0.0
    %1417 = vmatpush1.msra.mxu0 0.0
    %1418 = vmatprep.subr.mxu0 0.0
    %1419 = vmatpush1.msra.mxu0 0.0
    %1420 = vmatprep.subr.mxu0 0.0
    %1421 = vmatpush1.msra.mxu0 0.0
    %1422 = vmatprep.subr.mxu0 0.0
    %1423 = vmatpush1.msra.mxu0 0.0
    %1424 = vmatprep.subr.mxu0 0.0
    %1425 = vmatpush1.msra.mxu0 0.0
    %1426 = vmatprep.subr.mxu0 0.0
    %1427 = vmatpush1.msra.mxu0 0.0
    %1428 = vmatprep.subr.mxu0 0.0
    %1429 = vmatpush1.msra.mxu0 0.0
    %1430 = vmatprep.subr.mxu0 0.0
    %1431 = vmatpush1.msra.mxu0 0.0
    %1432 = vmatprep.subr.mxu0 0.0
    %1433 = vmatpush1.msra.mxu0 0.0
    %1434 = vmatprep.subr.mxu0 0.0
    %1435 = vmatpush1.msra.mxu0 0.0
    %1436 = vmatprep.subr.mxu0 0.0
    %1437 = vmatpush1.msra.mxu0 0.0
    %1438 = vmatprep.subr.mxu0 0.0
    %1439 = vmatpush1.msra.mxu0 0.0
    %1440 = vmatprep.subr.mxu0 0.0
    %1441 = vmatpush1.msra.mxu0 0.0
    %1442 = vmatprep.subr.mxu0 0.0
    %1443 = vmatpush1.msra.mxu0 0.0
    %1444 = vmatprep.subr.mxu0 0.0
    %1445 = vmatpush1.msra.mxu0 0.0
    %1446 = vmatprep.subr.mxu0 0.0
    %1447 = vmatpush1.msra.mxu0 0.0
    %1448 = vmatprep.subr.mxu0 0.0
    %1449 = vmatpush1.msra.mxu0 0.0
    %1450 = vmatprep.subr.mxu0 0.0
    %1451 = vmatpush1.msra.mxu0 0.0
    %1452 = vmatprep.subr.mxu0 0.0
    %1453 = vmatpush1.msra.mxu0 0.0
    %1454 = vmatprep.subr.mxu0 0.0
    %1455 = vmatpush1.msra.mxu0 0.0
    %1456 = vmatprep.subr.mxu0 0.0
    %1457 = vmatpush1.msra.mxu0 0.0
    %1458 = vmatprep.subr.mxu0 0.0
    %1459 = vmatpush1.msra.mxu0 0.0
    %1460 = vmatprep.subr.mxu0 0.0
    %1461 = vmatpush1.msra.mxu0 0.0
    %1462 = vmatprep.subr.mxu0 0.0
    %1463 = vmatpush1.msra.mxu0 0.0
    %1464 = vmatprep.subr.mxu0 0.0
    %1465 = vmatpush1.msra.mxu0 0.0
    %1466 = vmatprep.subr.mxu0 0.0
    %1467 = vmatpush1.msra.mxu0 0.0
    %1468 = vmatprep.subr.mxu0 0.0
    %1469 = vmatpush1.msra.mxu0 0.0
    %1470 = vmatprep.mubr.f32.mxu0 0.0
    %1471 = vmatmul.mubr.f32.gmra.mrb[0].mxu0 %v37
    %v1472 = vpop.f32.mrb[0].mxu0
    %v1473 = vadd.f32 0.0, %v1472
    %v1474 = vpop.f32.mrb[0].mxu0
    %1475 = vmatprep.mubr.f32.mxu0 0.0
    %1476 = vmatmul.mubr.f32.gmra.mrb[0].mxu0 %v40
    %v1477 = vpop.f32.mrb[0].mxu0
    %v1478 = vadd.f32 0.0, %v1477
    %v1479 = vpop.f32.mrb[0].mxu0
    %1480 = vdwg.mxu0
    %s1481 = scalar_lea.vmem %s4, 64
    %v1482 = vld [vmem:[%s1481] sm:$0xff]
    %v1483 = vld [vmem:[%s1481 + $0x8] sm:$0xff]
    %v1484 = vld [vmem:[%s1481 + $0x10] sm:$0xff]
    %v1485 = vld [vmem:[%s1481 + $0x18] sm:$0xff]
    %1486 = vmatprep.subr.mxu0 0.0
    %1487 = vmatpush1.msra.mxu0 %v1482
    %1488 = vmatprep.subr.mxu0 0.0
    %1489 = vmatpush1.msra.mxu0 %v1483
    %1490 = vmatprep.subr.mxu0 0.0
    %1491 = vmatpush1.msra.mxu0 %v1484
    %1492 = vmatprep.subr.mxu0 0.0
    %1493 = vmatpush1.msra.mxu0 %v1485
    %1494 = vmatprep.subr.mxu0 0.0
    %1495 = vmatpush1.msra.mxu0 0.0
    %1496 = vmatprep.subr.mxu0 0.0
    %1497 = vmatpush1.msra.mxu0 0.0
    %1498 = vmatprep.subr.mxu0 0.0
    %1499 = vmatpush1.msra.mxu0 0.0
    %1500 = vmatprep.subr.mxu0 0.0
    %1501 = vmatpush1.msra.mxu0 0.0
    %1502 = vmatprep.subr.mxu0 0.0
    %1503 = vmatpush1.msra.mxu0 0.0
    %1504 = vmatprep.subr.mxu0 0.0
    %1505 = vmatpush1.msra.mxu0 0.0
    %1506 = vmatprep.subr.mxu0 0.0
    %1507 = vmatpush1.msra.mxu0 0.0
    %1508 = vmatprep.subr.mxu0 0.0
    %1509 = vmatpush1.msra.mxu0 0.0
    %1510 = vmatprep.subr.mxu0 0.0
    %1511 = vmatpush1.msra.mxu0 0.0
    %1512 = vmatprep.subr.mxu0 0.0
    %1513 = vmatpush1.msra.mxu0 0.0
    %1514 = vmatprep.subr.mxu0 0.0
    %1515 = vmatpush1.msra.mxu0 0.0
    %1516 = vmatprep.subr.mxu0 0.0
    %1517 = vmatpush1.msra.mxu0 0.0
    %1518 = vmatprep.subr.mxu0 0.0
    %1519 = vmatpush1.msra.mxu0 0.0
    %1520 = vmatprep.subr.mxu0 0.0
    %1521 = vmatpush1.msra.mxu0 0.0
    %1522 = vmatprep.subr.mxu0 0.0
    %1523 = vmatpush1.msra.mxu0 0.0
    %1524 = vmatprep.subr.mxu0 0.0
    %1525 = vmatpush1.msra.mxu0 0.0
    %1526 = vmatprep.subr.mxu0 0.0
    %1527 = vmatpush1.msra.mxu0 0.0
    %1528 = vmatprep.subr.mxu0 0.0
    %1529 = vmatpush1.msra.mxu0 0.0
    %1530 = vmatprep.subr.mxu0 0.0
    %1531 = vmatpush1.msra.mxu0 0.0
    %1532 = vmatprep.subr.mxu0 0.0
    %1533 = vmatpush1.msra.mxu0 0.0
    %1534 = vmatprep.subr.mxu0 0.0
    %1535 = vmatpush1.msra.mxu0 0.0
    %1536 = vmatprep.subr.mxu0 0.0
    %1537 = vmatpush1.msra.mxu0 0.0
    %1538 = vmatprep.subr.mxu0 0.0
    %1539 = vmatpush1.msra.mxu0 0.0
    %1540 = vmatprep.subr.mxu0 0.0
    %1541 = vmatpush1.msra.mxu0 0.0
    %1542 = vmatprep.subr.mxu0 0.0
    %1543 = vmatpush1.msra.mxu0 0.0
    %1544 = vmatprep.subr.mxu0 0.0
    %1545 = vmatpush1.msra.mxu0 0.0
    %1546 = vmatprep.subr.mxu0 0.0
    %1547 = vmatpush1.msra.mxu0 0.0
    %1548 = vmatprep.subr.mxu0 0.0
    %1549 = vmatpush1.msra.mxu0 0.0
    %1550 = vmatprep.mubr.f32.mxu0 0.0
    %1551 = vmatmul.mubr.f32.gmra.mrb[0].mxu0 %v37
    %v1552 = vpop.f32.mrb[0].mxu0
    %v1553 = vadd.f32 0.0, %v1552
    %v1554 = vpop.f32.mrb[0].mxu0
    %1555 = vmatprep.mubr.f32.mxu0 0.0
    %1556 = vmatmul.mubr.f32.gmra.mrb[0].mxu0 %v40
    %v1557 = vpop.f32.mrb[0].mxu0
    %v1558 = vadd.f32 0.0, %v1557
    %v1559 = vpop.f32.mrb[0].mxu0
    %1560 = vdwg.mxu0
    %v1562 = vsel %vm275, %v1393, 0
    %v1565 = vsel %vm275, %v1473, 0
    %1567 = vmatprep.subr.mxu0 0.0
    %1568 = vmatpush1.xpose.msra.mxu0 %v1565
    %1569 = vmatprep.subr.mxu0 0.0
    %1570 = vmatpush1.xpose.msra.mxu0 0.0
    %1571 = vmatprep.subr.mxu0 0.0
    %1572 = vmatpush1.xpose.msra.mxu0 0.0
    %1573 = vmatprep.subr.mxu0 0.0
    %1574 = vmatpush1.xpose.msra.mxu0 0.0
    %1575 = vmatprep.subr.mxu0 0.0
    %1576 = vmatpush1.xpose.msra.mxu0 0.0
    %1577 = vmatprep.subr.mxu0 0.0
    %1578 = vmatpush1.xpose.msra.mxu0 0.0
    %1579 = vmatprep.subr.mxu0 0.0
    %1580 = vmatpush1.xpose.msra.mxu0 0.0
    %1581 = vmatprep.subr.mxu0 0.0
    %1582 = vmatpush1.xpose.msra.mxu0 0.0
    %1583 = vmatprep.subr.mxu0 0.0
    %1584 = vmatpush1.xpose.msra.mxu0 0.0
    %1585 = vmatprep.subr.mxu0 0.0
    %1586 = vmatpush1.xpose.msra.mxu0 0.0
    %1587 = vmatprep.subr.mxu0 0.0
    %1588 = vmatpush1.xpose.msra.mxu0 0.0
    %1589 = vmatprep.subr.mxu0 0.0
    %1590 = vmatpush1.xpose.msra.mxu0 0.0
    %1591 = vmatprep.subr.mxu0 0.0
    %1592 = vmatpush1.xpose.msra.mxu0 0.0
    %1593 = vmatprep.subr.mxu0 0.0
    %1594 = vmatpush1.xpose.msra.mxu0 0.0
    %1595 = vmatprep.subr.mxu0 0.0
    %1596 = vmatpush1.xpose.msra.mxu0 0.0
    %1597 = vmatprep.subr.mxu0 0.0
    %1598 = vmatpush1.xpose.msra.mxu0 0.0
    %1599 = vmatprep.subr.mxu0 0.0
    %1600 = vmatpush1.xpose.msra.mxu0 0.0
    %1601 = vmatprep.subr.mxu0 0.0
    %1602 = vmatpush1.xpose.msra.mxu0 0.0
    %1603 = vmatprep.subr.mxu0 0.0
    %1604 = vmatpush1.xpose.msra.mxu0 0.0
    %1605 = vmatprep.subr.mxu0 0.0
    %1606 = vmatpush1.xpose.msra.mxu0 0.0
    %1607 = vmatprep.subr.mxu0 0.0
    %1608 = vmatpush1.xpose.msra.mxu0 0.0
    %1609 = vmatprep.subr.mxu0 0.0
    %1610 = vmatpush1.xpose.msra.mxu0 0.0
    %1611 = vmatprep.subr.mxu0 0.0
    %1612 = vmatpush1.xpose.msra.mxu0 0.0
    %1613 = vmatprep.subr.mxu0 0.0
    %1614 = vmatpush1.xpose.msra.mxu0 0.0
    %1615 = vmatprep.subr.mxu0 0.0
    %1616 = vmatpush1.xpose.msra.mxu0 0.0
    %1617 = vmatprep.subr.mxu0 0.0
    %1618 = vmatpush1.xpose.msra.mxu0 0.0
    %1619 = vmatprep.subr.mxu0 0.0
    %1620 = vmatpush1.xpose.msra.mxu0 0.0
    %1621 = vmatprep.subr.mxu0 0.0
    %1622 = vmatpush1.xpose.msra.mxu0 0.0
    %1623 = vmatprep.subr.mxu0 0.0
    %1624 = vmatpush1.xpose.msra.mxu0 0.0
    %1625 = vmatprep.subr.mxu0 0.0
    %1626 = vmatpush1.xpose.msra.mxu0 0.0
    %1627 = vmatprep.subr.mxu0 0.0
    %1628 = vmatpush1.xpose.msra.mxu0 0.0
    %1629 = vmatprep.subr.mxu0 0.0
    %1630 = vmatpush1.xpose.msra.mxu0 0.0
    %1631 = vmatprep.mubr.f32.mxu0 0.0
    %1632 = vmatmul.mubr.f32.gmra.mrb[0].mxu0 %v1562
    %v1633 = vpop.f32.mrb[0].mxu0
    %v1634 = vadd.f32 %v27, %v1633
    %v1635 = vpop.f32.mrb[0].mxu0
    %1636 = vdwg.mxu0
    %v1638 = vsel %vm275, %v1398, 0
    %v1641 = vsel %vm275, %v1478, 0
    %1643 = vmatprep.subr.mxu0 0.0
    %1644 = vmatpush1.xpose.msra.mxu0 %v1641
    %1645 = vmatprep.subr.mxu0 0.0
    %1646 = vmatpush1.xpose.msra.mxu0 0.0
    %1647 = vmatprep.subr.mxu0 0.0
    %1648 = vmatpush1.xpose.msra.mxu0 0.0
    %1649 = vmatprep.subr.mxu0 0.0
    %1650 = vmatpush1.xpose.msra.mxu0 0.0
    %1651 = vmatprep.subr.mxu0 0.0
    %1652 = vmatpush1.xpose.msra.mxu0 0.0
    %1653 = vmatprep.subr.mxu0 0.0
    %1654 = vmatpush1.xpose.msra.mxu0 0.0
    %1655 = vmatprep.subr.mxu0 0.0
    %1656 = vmatpush1.xpose.msra.mxu0 0.0
    %1657 = vmatprep.subr.mxu0 0.0
    %1658 = vmatpush1.xpose.msra.mxu0 0.0
    %1659 = vmatprep.subr.mxu0 0.0
    %1660 = vmatpush1.xpose.msra.mxu0 0.0
    %1661 = vmatprep.subr.mxu0 0.0
    %1662 = vmatpush1.xpose.msra.mxu0 0.0
    %1663 = vmatprep.subr.mxu0 0.0
    %1664 = vmatpush1.xpose.msra.mxu0 0.0
    %1665 = vmatprep.subr.mxu0 0.0
    %1666 = vmatpush1.xpose.msra.mxu0 0.0
    %1667 = vmatprep.subr.mxu0 0.0
    %1668 = vmatpush1.xpose.msra.mxu0 0.0
    %1669 = vmatprep.subr.mxu0 0.0
    %1670 = vmatpush1.xpose.msra.mxu0 0.0
    %1671 = vmatprep.subr.mxu0 0.0
    %1672 = vmatpush1.xpose.msra.mxu0 0.0
    %1673 = vmatprep.subr.mxu0 0.0
    %1674 = vmatpush1.xpose.msra.mxu0 0.0
    %1675 = vmatprep.subr.mxu0 0.0
    %1676 = vmatpush1.xpose.msra.mxu0 0.0
    %1677 = vmatprep.subr.mxu0 0.0
    %1678 = vmatpush1.xpose.msra.mxu0 0.0
    %1679 = vmatprep.subr.mxu0 0.0
    %1680 = vmatpush1.xpose.msra.mxu0 0.0
    %1681 = vmatprep.subr.mxu0 0.0
    %1682 = vmatpush1.xpose.msra.mxu0 0.0
    %1683 = vmatprep.subr.mxu0 0.0
    %1684 = vmatpush1.xpose.msra.mxu0 0.0
    %1685 = vmatprep.subr.mxu0 0.0
    %1686 = vmatpush1.xpose.msra.mxu0 0.0
    %1687 = vmatprep.subr.mxu0 0.0
    %1688 = vmatpush1.xpose.msra.mxu0 0.0
    %1689 = vmatprep.subr.mxu0 0.0
    %1690 = vmatpush1.xpose.msra.mxu0 0.0
    %1691 = vmatprep.subr.mxu0 0.0
    %1692 = vmatpush1.xpose.msra.mxu0 0.0
    %1693 = vmatprep.subr.mxu0 0.0
    %1694 = vmatpush1.xpose.msra.mxu0 0.0
    %1695 = vmatprep.subr.mxu0 0.0
    %1696 = vmatpush1.xpose.msra.mxu0 0.0
    %1697 = vmatprep.subr.mxu0 0.0
    %1698 = vmatpush1.xpose.msra.mxu0 0.0
    %1699 = vmatprep.subr.mxu0 0.0
    %1700 = vmatpush1.xpose.msra.mxu0 0.0
    %1701 = vmatprep.subr.mxu0 0.0
    %1702 = vmatpush1.xpose.msra.mxu0 0.0
    %1703 = vmatprep.subr.mxu0 0.0
    %1704 = vmatpush1.xpose.msra.mxu0 0.0
    %1705 = vmatprep.subr.mxu0 0.0
    %1706 = vmatpush1.xpose.msra.mxu0 0.0
    %1707 = vmatprep.mubr.f32.mxu0 0.0
    %1708 = vmatmul.mubr.f32.gmra.mrb[0].mxu0 %v1638
    %v1709 = vpop.f32.mrb[0].mxu0
    %v1710 = vadd.f32 %v27, %v1709
    %v1711 = vpop.f32.mrb[0].mxu0
    %1712 = vdwg.mxu0
    %v1713 = vsel %vm275, %v1634, -inf
    %1714 = vmax.xlane.f32.xlu0 %v1713
    %v1715 = vpop.xlane.xlu0 %1714
    %v1716 = vsel %vm275, %v1710, -inf
    %1717 = vmax.xlane.f32.xlu0 %v1716
    %v1718 = vpop.xlane.xlu0 %1717
    %v1719 = vsub.f32 %v1634, %v1715
    %v1720 = vsub.f32 %v1710, %v1718
    %v1721 = vmul.f32 %v1719, 1.442695
    %v1722 = vpow.pop %v1721
    %v1723 = vmul.f32 %v1720, 1.442695
    %v1724 = vpow.pop %v1723
    %v1725 = vsel %vm275, %v1722, 0.0
    %1726 = vadd.xlane.f32.xlu0 %v1725
    %v1727 = vpop.xlane.xlu0 %1726
    %v1728 = vsel %vm275, %v1724, 0.0
    %1729 = vadd.xlane.f32.xlu0 %v1728
    %v1730 = vpop.xlane.xlu0 %1729
    %v1731 = vrcp.pop %v1727
    %v1732 = vrcp.pop %v1730
    %v1733 = vmul.f32 %v1722, %v1731
    %v1734 = vmul.f32 %v1724, %v1732
    %v1736 = vsel %vm275, %v1733, 0
    %1738 = vmatprep.subr.mxu0 0.0
    %1739 = vmatpush1.msra.mxu0 %v1553
    %1740 = vmatprep.subr.mxu0 0.0
    %1741 = vmatpush1.msra.mxu0 0.0
    %1742 = vmatprep.subr.mxu0 0.0
    %1743 = vmatpush1.msra.mxu0 0.0
    %1744 = vmatprep.subr.mxu0 0.0
    %1745 = vmatpush1.msra.mxu0 0.0
    %1746 = vmatprep.subr.mxu0 0.0
    %1747 = vmatpush1.msra.mxu0 0.0
    %1748 = vmatprep.subr.mxu0 0.0
    %1749 = vmatpush1.msra.mxu0 0.0
    %1750 = vmatprep.subr.mxu0 0.0
    %1751 = vmatpush1.msra.mxu0 0.0
    %1752 = vmatprep.subr.mxu0 0.0
    %1753 = vmatpush1.msra.mxu0 0.0
    %1754 = vmatprep.subr.mxu0 0.0
    %1755 = vmatpush1.msra.mxu0 0.0
    %1756 = vmatprep.subr.mxu0 0.0
    %1757 = vmatpush1.msra.mxu0 0.0
    %1758 = vmatprep.subr.mxu0 0.0
    %1759 = vmatpush1.msra.mxu0 0.0
    %1760 = vmatprep.subr.mxu0 0.0
    %1761 = vmatpush1.msra.mxu0 0.0
    %1762 = vmatprep.subr.mxu0 0.0
    %1763 = vmatpush1.msra.mxu0 0.0
    %1764 = vmatprep.subr.mxu0 0.0
    %1765 = vmatpush1.msra.mxu0 0.0
    %1766 = vmatprep.subr.mxu0 0.0
    %1767 = vmatpush1.msra.mxu0 0.0
    %1768 = vmatprep.subr.mxu0 0.0
    %1769 = vmatpush1.msra.mxu0 0.0
    %1770 = vmatprep.subr.mxu0 0.0
    %1771 = vmatpush1.msra.mxu0 0.0
    %1772 = vmatprep.subr.mxu0 0.0
    %1773 = vmatpush1.msra.mxu0 0.0
    %1774 = vmatprep.subr.mxu0 0.0
    %1775 = vmatpush1.msra.mxu0 0.0
    %1776 = vmatprep.subr.mxu0 0.0
    %1777 = vmatpush1.msra.mxu0 0.0
    %1778 = vmatprep.subr.mxu0 0.0
    %1779 = vmatpush1.msra.mxu0 0.0
    %1780 = vmatprep.subr.mxu0 0.0
    %1781 = vmatpush1.msra.mxu0 0.0
    %1782 = vmatprep.subr.mxu0 0.0
    %1783 = vmatpush1.msra.mxu0 0.0
    %1784 = vmatprep.subr.mxu0 0.0
    %1785 = vmatpush1.msra.mxu0 0.0
    %1786 = vmatprep.subr.mxu0 0.0
    %1787 = vmatpush1.msra.mxu0 0.0
    %1788 = vmatprep.subr.mxu0 0.0
    %1789 = vmatpush1.msra.mxu0 0.0
    %1790 = vmatprep.subr.mxu0 0.0
    %1791 = vmatpush1.msra.mxu0 0.0
    %1792 = vmatprep.subr.mxu0 0.0
    %1793 = vmatpush1.msra.mxu0 0.0
    %1794 = vmatprep.subr.mxu0 0.0
    %1795 = vmatpush1.msra.mxu0 0.0
    %1796 = vmatprep.subr.mxu0 0.0
    %1797 = vmatpush1.msra.mxu0 0.0
    %1798 = vmatprep.subr.mxu0 0.0
    %1799 = vmatpush1.msra.mxu0 0.0
    %1800 = vmatprep.subr.mxu0 0.0
    %1801 = vmatpush1.msra.mxu0 0.0
    %1802 = vmatprep.mubr.f32.mxu0 0.0
    %1803 = vmatmul.mubr.f32.gmra.mrb[0].mxu0 %v1736
    %v1804 = vpop.f32.mrb[0].mxu0
    %v1805 = vadd.f32 0.0, %v1804
    %v1806 = vpop.f32.mrb[0].mxu0
    %1807 = vdwg.mxu0
    %v1809 = vsel %vm275, %v1734, 0
    %1811 = vmatprep.subr.mxu0 0.0
    %1812 = vmatpush1.msra.mxu0 %v1558
    %1813 = vmatprep.subr.mxu0 0.0
    %1814 = vmatpush1.msra.mxu0 0.0
    %1815 = vmatprep.subr.mxu0 0.0
    %1816 = vmatpush1.msra.mxu0 0.0
    %1817 = vmatprep.subr.mxu0 0.0
    %1818 = vmatpush1.msra.mxu0 0.0
    %1819 = vmatprep.subr.mxu0 0.0
    %1820 = vmatpush1.msra.mxu0 0.0
    %1821 = vmatprep.subr.mxu0 0.0
    %1822 = vmatpush1.msra.mxu0 0.0
    %1823 = vmatprep.subr.mxu0 0.0
    %1824 = vmatpush1.msra.mxu0 0.0
    %1825 = vmatprep.subr.mxu0 0.0
    %1826 = vmatpush1.msra.mxu0 0.0
    %1827 = vmatprep.subr.mxu0 0.0
    %1828 = vmatpush1.msra.mxu0 0.0
    %1829 = vmatprep.subr.mxu0 0.0
    %1830 = vmatpush1.msra.mxu0 0.0
    %1831 = vmatprep.subr.mxu0 0.0
    %1832 = vmatpush1.msra.mxu0 0.0
    %1833 = vmatprep.subr.mxu0 0.0
    %1834 = vmatpush1.msra.mxu0 0.0
    %1835 = vmatprep.subr.mxu0 0.0
    %1836 = vmatpush1.msra.mxu0 0.0
    %1837 = vmatprep.subr.mxu0 0.0
    %1838 = vmatpush1.msra.mxu0 0.0
    %1839 = vmatprep.subr.mxu0 0.0
    %1840 = vmatpush1.msra.mxu0 0.0
    %1841 = vmatprep.subr.mxu0 0.0
    %1842 = vmatpush1.msra.mxu0 0.0
    %1843 = vmatprep.subr.mxu0 0.0
    %1844 = vmatpush1.msra.mxu0 0.0
    %1845 = vmatprep.subr.mxu0 0.0
    %1846 = vmatpush1.msra.mxu0 0.0
    %1847 = vmatprep.subr.mxu0 0.0
    %1848 = vmatpush1.msra.mxu0 0.0
    %1849 = vmatprep.subr.mxu0 0.0
    %1850 = vmatpush1.msra.mxu0 0.0
    %1851 = vmatprep.subr.mxu0 0.0
    %1852 = vmatpush1.msra.mxu0 0.0
    %1853 = vmatprep.subr.mxu0 0.0
    %1854 = vmatpush1.msra.mxu0 0.0
    %1855 = vmatprep.subr.mxu0 0.0
    %1856 = vmatpush1.msra.mxu0 0.0
    %1857 = vmatprep.subr.mxu0 0.0
    %1858 = vmatpush1.msra.mxu0 0.0
    %1859 = vmatprep.subr.mxu0 0.0
    %1860 = vmatpush1.msra.mxu0 0.0
    %1861 = vmatprep.subr.mxu0 0.0
    %1862 = vmatpush1.msra.mxu0 0.0
    %1863 = vmatprep.subr.mxu0 0.0
    %1864 = vmatpush1.msra.mxu0 0.0
    %1865 = vmatprep.subr.mxu0 0.0
    %1866 = vmatpush1.msra.mxu0 0.0
    %1867 = vmatprep.subr.mxu0 0.0
    %1868 = vmatpush1.msra.mxu0 0.0
    %1869 = vmatprep.subr.mxu0 0.0
    %1870 = vmatpush1.msra.mxu0 0.0
    %1871 = vmatprep.subr.mxu0 0.0
    %1872 = vmatpush1.msra.mxu0 0.0
    %1873 = vmatprep.subr.mxu0 0.0
    %1874 = vmatpush1.msra.mxu0 0.0
    %1875 = vmatprep.mubr.f32.mxu0 0.0
    %1876 = vmatmul.mubr.f32.gmra.mrb[0].mxu0 %v1809
    %v1877 = vpop.f32.mrb[0].mxu0
    %v1878 = vadd.f32 0.0, %v1877
    %v1879 = vpop.f32.mrb[0].mxu0
    %1880 = vdwg.mxu0
    %s1881 = scalar_lea.vmem %s5, 16
    %v1882 = vld [vmem:[%s1881] sm:$0xff]
    %v1884 = vsel %vm275, %v1805, 0
    %v1887 = vsel %vm275, %v1878, 0
    %1889 = vmatprep.subr.mxu0 0.0
    %1890 = vmatpush1.msra.mxu0 %v1882
    %1891 = vmatprep.subr.mxu0 0.0
    %1892 = vmatpush1.msra.mxu0 0.0
    %1893 = vmatprep.subr.mxu0 0.0
    %1894 = vmatpush1.msra.mxu0 0.0
    %1895 = vmatprep.subr.mxu0 0.0
    %1896 = vmatpush1.msra.mxu0 0.0
    %1897 = vmatprep.subr.mxu0 0.0
    %1898 = vmatpush1.msra.mxu0 0.0
    %1899 = vmatprep.subr.mxu0 0.0
    %1900 = vmatpush1.msra.mxu0 0.0
    %1901 = vmatprep.subr.mxu0 0.0
    %1902 = vmatpush1.msra.mxu0 0.0
    %1903 = vmatprep.subr.mxu0 0.0
    %1904 = vmatpush1.msra.mxu0 0.0
    %1905 = vmatprep.subr.mxu0 0.0
    %1906 = vmatpush1.msra.mxu0 0.0
    %1907 = vmatprep.subr.mxu0 0.0
    %1908 = vmatpush1.msra.mxu0 0.0
    %1909 = vmatprep.subr.mxu0 0.0
    %1910 = vmatpush1.msra.mxu0 0.0
    %1911 = vmatprep.subr.mxu0 0.0
    %1912 = vmatpush1.msra.mxu0 0.0
    %1913 = vmatprep.subr.mxu0 0.0
    %1914 = vmatpush1.msra.mxu0 0.0
    %1915 = vmatprep.subr.mxu0 0.0
    %1916 = vmatpush1.msra.mxu0 0.0
    %1917 = vmatprep.subr.mxu0 0.0
    %1918 = vmatpush1.msra.mxu0 0.0
    %1919 = vmatprep.subr.mxu0 0.0
    %1920 = vmatpush1.msra.mxu0 0.0
    %1921 = vmatprep.subr.mxu0 0.0
    %1922 = vmatpush1.msra.mxu0 0.0
    %1923 = vmatprep.subr.mxu0 0.0
    %1924 = vmatpush1.msra.mxu0 0.0
    %1925 = vmatprep.subr.mxu0 0.0
    %1926 = vmatpush1.msra.mxu0 0.0
    %1927 = vmatprep.subr.mxu0 0.0
    %1928 = vmatpush1.msra.mxu0 0.0
    %1929 = vmatprep.subr.mxu0 0.0
    %1930 = vmatpush1.msra.mxu0 0.0
    %1931 = vmatprep.subr.mxu0 0.0
    %1932 = vmatpush1.msra.mxu0 0.0
    %1933 = vmatprep.subr.mxu0 0.0
    %1934 = vmatpush1.msra.mxu0 0.0
    %1935 = vmatprep.subr.mxu0 0.0
    %1936 = vmatpush1.msra.mxu0 0.0
    %1937 = vmatprep.subr.mxu0 0.0
    %1938 = vmatpush1.msra.mxu0 0.0
    %1939 = vmatprep.subr.mxu0 0.0
    %1940 = vmatpush1.msra.mxu0 0.0
    %1941 = vmatprep.subr.mxu0 0.0
    %1942 = vmatpush1.msra.mxu0 0.0
    %1943 = vmatprep.subr.mxu0 0.0
    %1944 = vmatpush1.msra.mxu0 0.0
    %1945 = vmatprep.subr.mxu0 0.0
    %1946 = vmatpush1.msra.mxu0 0.0
    %1947 = vmatprep.subr.mxu0 0.0
    %1948 = vmatpush1.msra.mxu0 0.0
    %1949 = vmatprep.subr.mxu0 0.0
    %1950 = vmatpush1.msra.mxu0 0.0
    %1951 = vmatprep.subr.mxu0 0.0
    %1952 = vmatpush1.msra.mxu0 0.0
    %1953 = vmatprep.mubr.f32.mxu0 0.0
    %1954 = vmatmul.mubr.f32.gmra.mrb[0].mxu0 %v1884
    %v1955 = vpop.f32.mrb[0].mxu0
    %v1956 = vadd.f32 0.0, %v1955
    %v1957 = vpop.f32.mrb[0].mxu0
    %1958 = vmatprep.mubr.f32.mxu0 0.0
    %1959 = vmatmul.mubr.f32.gmra.mrb[0].mxu0 %v1887
    %v1960 = vpop.f32.mrb[0].mxu0
    %v1961 = vadd.f32 0.0, %v1960
    %v1962 = vpop.f32.mrb[0].mxu0
    %1963 = vdwg.mxu0
    %v1964 = vadd.f32 %v1313, %v1956
    %v1965 = vadd.f32 %v1318, %v1961
    %s1966 = scalar_lea.vmem %s2, 96
    %v1967 = vld [vmem:[%s1966] sm:$0xff]
    %v1968 = vld [vmem:[%s1966 + $0x8] sm:$0xff]
    %v1969 = vld [vmem:[%s1966 + $0x10] sm:$0xff]
    %v1970 = vld [vmem:[%s1966 + $0x18] sm:$0xff]
    %1971 = vmatprep.subr.mxu0 0.0
    %1972 = vmatpush1.msra.mxu0 %v1967
    %1973 = vmatprep.subr.mxu0 0.0
    %1974 = vmatpush1.msra.mxu0 %v1968
    %1975 = vmatprep.subr.mxu0 0.0
    %1976 = vmatpush1.msra.mxu0 %v1969
    %1977 = vmatprep.subr.mxu0 0.0
    %1978 = vmatpush1.msra.mxu0 %v1970
    %1979 = vmatprep.subr.mxu0 0.0
    %1980 = vmatpush1.msra.mxu0 0.0
    %1981 = vmatprep.subr.mxu0 0.0
    %1982 = vmatpush1.msra.mxu0 0.0
    %1983 = vmatprep.subr.mxu0 0.0
    %1984 = vmatpush1.msra.mxu0 0.0
    %1985 = vmatprep.subr.mxu0 0.0
    %1986 = vmatpush1.msra.mxu0 0.0
    %1987 = vmatprep.subr.mxu0 0.0
    %1988 = vmatpush1.msra.mxu0 0.0
    %1989 = vmatprep.subr.mxu0 0.0
    %1990 = vmatpush1.msra.mxu0 0.0
    %1991 = vmatprep.subr.mxu0 0.0
    %1992 = vmatpush1.msra.mxu0 0.0
    %1993 = vmatprep.subr.mxu0 0.0
    %1994 = vmatpush1.msra.mxu0 0.0
    %1995 = vmatprep.subr.mxu0 0.0
    %1996 = vmatpush1.msra.mxu0 0.0
    %1997 = vmatprep.subr.mxu0 0.0
    %1998 = vmatpush1.msra.mxu0 0.0
    %1999 = vmatprep.subr.mxu0 0.0
    %2000 = vmatpush1.msra.mxu0 0.0
    %2001 = vmatprep.subr.mxu0 0.0
    %2002 = vmatpush1.msra.mxu0 0.0
    %2003 = vmatprep.subr.mxu0 0.0
    %2004 = vmatpush1.msra.mxu0 0.0
    %2005 = vmatprep.subr.mxu0 0.0
    %2006 = vmatpush1.msra.mxu0 0.0
    %2007 = vmatprep.subr.mxu0 0.0
    %2008 = vmatpush1.msra.mxu0 0.0
    %2009 = vmatprep.subr.mxu0 0.0
    %2010 = vmatpush1.msra.mxu0 0.0
    %2011 = vmatprep.subr.mxu0 0.0
    %2012 = vmatpush1.msra.mxu0 0.0
    %2013 = vmatprep.subr.mxu0 0.0
    %2014 = vmatpush1.msra.mxu0 0.0
    %2015 = vmatprep.subr.mxu0 0.0
    %2016 = vmatpush1.msra.mxu0 0.0
    %2017 = vmatprep.subr.mxu0 0.0
    %2018 = vmatpush1.msra.mxu0 0.0
    %2019 = vmatprep.subr.mxu0 0.0
    %2020 = vmatpush1.msra.mxu0 0.0
    %2021 = vmatprep.subr.mxu0 0.0
    %2022 = vmatpush1.msra.mxu0 0.0
    %2023 = vmatprep.subr.mxu0 0.0
    %2024 = vmatpush1.msra.mxu0 0.0
    %2025 = vmatprep.subr.mxu0 0.0
    %2026 = vmatpush1.msra.mxu0 0.0
    %2027 = vmatprep.subr.mxu0 0.0
    %2028 = vmatpush1.msra.mxu0 0.0
    %2029 = vmatprep.subr.mxu0 0.0
    %2030 = vmatpush1.msra.mxu0 0.0
    %2031 = vmatprep.subr.mxu0 0.0
    %2032 = vmatpush1.msra.mxu0 0.0
    %2033 = vmatprep.subr.mxu0 0.0
    %2034 = vmatpush1.msra.mxu0 0.0
    %2035 = vmatprep.mubr.f32.mxu0 0.0
    %2036 = vmatmul.mubr.f32.gmra.mrb[0].mxu0 %v37
    %v2037 = vpop.f32.mrb[0].mxu0
    %v2038 = vadd.f32 0.0, %v2037
    %v2039 = vpop.f32.mrb[0].mxu0
    %2040 = vmatprep.mubr.f32.mxu0 0.0
    %2041 = vmatmul.mubr.f32.gmra.mrb[0].mxu0 %v40
    %v2042 = vpop.f32.mrb[0].mxu0
    %v2043 = vadd.f32 0.0, %v2042
    %v2044 = vpop.f32.mrb[0].mxu0
    %2045 = vdwg.mxu0
    %s2046 = scalar_lea.vmem %s3, 96
    %v2047 = vld [vmem:[%s2046] sm:$0xff]
    %v2048 = vld [vmem:[%s2046 + $0x8] sm:$0xff]
    %v2049 = vld [vmem:[%s2046 + $0x10] sm:$0xff]
    %v2050 = vld [vmem:[%s2046 + $0x18] sm:$0xff]
    %2051 = vmatprep.subr.mxu0 0.0
    %2052 = vmatpush1.msra.mxu0 %v2047
    %2053 = vmatprep.subr.mxu0 0.0
    %2054 = vmatpush1.msra.mxu0 %v2048
    %2055 = vmatprep.subr.mxu0 0.0
    %2056 = vmatpush1.msra.mxu0 %v2049
    %2057 = vmatprep.subr.mxu0 0.0
    %2058 = vmatpush1.msra.mxu0 %v2050
    %2059 = vmatprep.subr.mxu0 0.0
    %2060 = vmatpush1.msra.mxu0 0.0
    %2061 = vmatprep.subr.mxu0 0.0
    %2062 = vmatpush1.msra.mxu0 0.0
    %2063 = vmatprep.subr.mxu0 0.0
    %2064 = vmatpush1.msra.mxu0 0.0
    %2065 = vmatprep.subr.mxu0 0.0
    %2066 = vmatpush1.msra.mxu0 0.0
    %2067 = vmatprep.subr.mxu0 0.0
    %2068 = vmatpush1.msra.mxu0 0.0
    %2069 = vmatprep.subr.mxu0 0.0
    %2070 = vmatpush1.msra.mxu0 0.0
    %2071 = vmatprep.subr.mxu0 0.0
    %2072 = vmatpush1.msra.mxu0 0.0
    %2073 = vmatprep.subr.mxu0 0.0
    %2074 = vmatpush1.msra.mxu0 0.0
    %2075 = vmatprep.subr.mxu0 0.0
    %2076 = vmatpush1.msra.mxu0 0.0
    %2077 = vmatprep.subr.mxu0 0.0
    %2078 = vmatpush1.msra.mxu0 0.0
    %2079 = vmatprep.subr.mxu0 0.0
    %2080 = vmatpush1.msra.mxu0 0.0
    %2081 = vmatprep.subr.mxu0 0.0
    %2082 = vmatpush1.msra.mxu0 0.0
    %2083 = vmatprep.subr.mxu0 0.0
    %2084 = vmatpush1.msra.mxu0 0.0
    %2085 = vmatprep.subr.mxu0 0.0
    %2086 = vmatpush1.msra.mxu0 0.0
    %2087 = vmatprep.subr.mxu0 0.0
    %2088 = vmatpush1.msra.mxu0 0.0
    %2089 = vmatprep.subr.mxu0 0.0
    %2090 = vmatpush1.msra.mxu0 0.0
    %2091 = vmatprep.subr.mxu0 0.0
    %2092 = vmatpush1.msra.mxu0 0.0
    %2093 = vmatprep.subr.mxu0 0.0
    %2094 = vmatpush1.msra.mxu0 0.0
    %2095 = vmatprep.subr.mxu0 0.0
    %2096 = vmatpush1.msra.mxu0 0.0
    %2097 = vmatprep.subr.mxu0 0.0
    %2098 = vmatpush1.msra.mxu0 0.0
    %2099 = vmatprep.subr.mxu0 0.0
    %2100 = vmatpush1.msra.mxu0 0.0
    %2101 = vmatprep.subr.mxu0 0.0
    %2102 = vmatpush1.msra.mxu0 0.0
    %2103 = vmatprep.subr.mxu0 0.0
    %2104 = vmatpush1.msra.mxu0 0.0
    %2105 = vmatprep.subr.mxu0 0.0
    %2106 = vmatpush1.msra.mxu0 0.0
    %2107 = vmatprep.subr.mxu0 0.0
    %2108 = vmatpush1.msra.mxu0 0.0
    %2109 = vmatprep.subr.mxu0 0.0
    %2110 = vmatpush1.msra.mxu0 0.0
    %2111 = vmatprep.subr.mxu0 0.0
    %2112 = vmatpush1.msra.mxu0 0.0
    %2113 = vmatprep.subr.mxu0 0.0
    %2114 = vmatpush1.msra.mxu0 0.0
    %2115 = vmatprep.mubr.f32.mxu0 0.0
    %2116 = vmatmul.mubr.f32.gmra.mrb[0].mxu0 %v37
    %v2117 = vpop.f32.mrb[0].mxu0
    %v2118 = vadd.f32 0.0, %v2117
    %v2119 = vpop.f32.mrb[0].mxu0
    %2120 = vmatprep.mubr.f32.mxu0 0.0
    %2121 = vmatmul.mubr.f32.gmra.mrb[0].mxu0 %v40
    %v2122 = vpop.f32.mrb[0].mxu0
    %v2123 = vadd.f32 0.0, %v2122
    %v2124 = vpop.f32.mrb[0].mxu0
    %2125 = vdwg.mxu0
    %s2126 = scalar_lea.vmem %s4, 96
    %v2127 = vld [vmem:[%s2126] sm:$0xff]
    %v2128 = vld [vmem:[%s2126 + $0x8] sm:$0xff]
    %v2129 = vld [vmem:[%s2126 + $0x10] sm:$0xff]
    %v2130 = vld [vmem:[%s2126 + $0x18] sm:$0xff]
    %2131 = vmatprep.subr.mxu0 0.0
    %2132 = vmatpush1.msra.mxu0 %v2127
    %2133 = vmatprep.subr.mxu0 0.0
    %2134 = vmatpush1.msra.mxu0 %v2128
    %2135 = vmatprep.subr.mxu0 0.0
    %2136 = vmatpush1.msra.mxu0 %v2129
    %2137 = vmatprep.subr.mxu0 0.0
    %2138 = vmatpush1.msra.mxu0 %v2130
    %2139 = vmatprep.subr.mxu0 0.0
    %2140 = vmatpush1.msra.mxu0 0.0
    %2141 = vmatprep.subr.mxu0 0.0
    %2142 = vmatpush1.msra.mxu0 0.0
    %2143 = vmatprep.subr.mxu0 0.0
    %2144 = vmatpush1.msra.mxu0 0.0
    %2145 = vmatprep.subr.mxu0 0.0
    %2146 = vmatpush1.msra.mxu0 0.0
    %2147 = vmatprep.subr.mxu0 0.0
    %2148 = vmatpush1.msra.mxu0 0.0
    %2149 = vmatprep.subr.mxu0 0.0
    %2150 = vmatpush1.msra.mxu0 0.0
    %2151 = vmatprep.subr.mxu0 0.0
    %2152 = vmatpush1.msra.mxu0 0.0
    %2153 = vmatprep.subr.mxu0 0.0
    %2154 = vmatpush1.msra.mxu0 0.0
    %2155 = vmatprep.subr.mxu0 0.0
    %2156 = vmatpush1.msra.mxu0 0.0
    %2157 = vmatprep.subr.mxu0 0.0
    %2158 = vmatpush1.msra.mxu0 0.0
    %2159 = vmatprep.subr.mxu0 0.0
    %2160 = vmatpush1.msra.mxu0 0.0
    %2161 = vmatprep.subr.mxu0 0.0
    %2162 = vmatpush1.msra.mxu0 0.0
    %2163 = vmatprep.subr.mxu0 0.0
    %2164 = vmatpush1.msra.mxu0 0.0
    %2165 = vmatprep.subr.mxu0 0.0
    %2166 = vmatpush1.msra.mxu0 0.0
    %2167 = vmatprep.subr.mxu0 0.0
    %2168 = vmatpush1.msra.mxu0 0.0
    %2169 = vmatprep.subr.mxu0 0.0
    %2170 = vmatpush1.msra.mxu0 0.0
    %2171 = vmatprep.subr.mxu0 0.0
    %2172 = vmatpush1.msra.mxu0 0.0
    %2173 = vmatprep.subr.mxu0 0.0
    %2174 = vmatpush1.msra.mxu0 0.0
    %2175 = vmatprep.subr.mxu0 0.0
    %2176 = vmatpush1.msra.mxu0 0.0
    %2177 = vmatprep.subr.mxu0 0.0
    %2178 = vmatpush1.msra.mxu0 0.0
    %2179 = vmatprep.subr.mxu0 0.0
    %2180 = vmatpush1.msra.mxu0 0.0
    %2181 = vmatprep.subr.mxu0 0.0
    %2182 = vmatpush1.msra.mxu0 0.0
    %2183 = vmatprep.subr.mxu0 0.0
    %2184 = vmatpush1.msra.mxu0 0.0
    %2185 = vmatprep.subr.mxu0 0.0
    %2186 = vmatpush1.msra.mxu0 0.0
    %2187 = vmatprep.subr.mxu0 0.0
    %2188 = vmatpush1.msra.mxu0 0.0
    %2189 = vmatprep.subr.mxu0 0.0
    %2190 = vmatpush1.msra.mxu0 0.0
    %2191 = vmatprep.subr.mxu0 0.0
    %2192 = vmatpush1.msra.mxu0 0.0
    %2193 = vmatprep.subr.mxu0 0.0
    %2194 = vmatpush1.msra.mxu0 0.0
    %2195 = vmatprep.mubr.f32.mxu0 0.0
    %2196 = vmatmul.mubr.f32.gmra.mrb[0].mxu0 %v37
    %v2197 = vpop.f32.mrb[0].mxu0
    %v2198 = vadd.f32 0.0, %v2197
    %v2199 = vpop.f32.mrb[0].mxu0
    %2200 = vmatprep.mubr.f32.mxu0 0.0
    %2201 = vmatmul.mubr.f32.gmra.mrb[0].mxu0 %v40
    %v2202 = vpop.f32.mrb[0].mxu0
    %v2203 = vadd.f32 0.0, %v2202
    %v2204 = vpop.f32.mrb[0].mxu0
    %2205 = vdwg.mxu0
    %v2207 = vsel %vm275, %v2038, 0
    %v2210 = vsel %vm275, %v2118, 0
    %2212 = vmatprep.subr.mxu0 0.0
    %2213 = vmatpush1.xpose.msra.mxu0 %v2210
    %2214 = vmatprep.subr.mxu0 0.0
    %2215 = vmatpush1.xpose.msra.mxu0 0.0
    %2216 = vmatprep.subr.mxu0 0.0
    %2217 = vmatpush1.xpose.msra.mxu0 0.0
    %2218 = vmatprep.subr.mxu0 0.0
    %2219 = vmatpush1.xpose.msra.mxu0 0.0
    %2220 = vmatprep.subr.mxu0 0.0
    %2221 = vmatpush1.xpose.msra.mxu0 0.0
    %2222 = vmatprep.subr.mxu0 0.0
    %2223 = vmatpush1.xpose.msra.mxu0 0.0
    %2224 = vmatprep.subr.mxu0 0.0
    %2225 = vmatpush1.xpose.msra.mxu0 0.0
    %2226 = vmatprep.subr.mxu0 0.0
    %2227 = vmatpush1.xpose.msra.mxu0 0.0
    %2228 = vmatprep.subr.mxu0 0.0
    %2229 = vmatpush1.xpose.msra.mxu0 0.0
    %2230 = vmatprep.subr.mxu0 0.0
    %2231 = vmatpush1.xpose.msra.mxu0 0.0
    %2232 = vmatprep.subr.mxu0 0.0
    %2233 = vmatpush1.xpose.msra.mxu0 0.0
    %2234 = vmatprep.subr.mxu0 0.0
    %2235 = vmatpush1.xpose.msra.mxu0 0.0
    %2236 = vmatprep.subr.mxu0 0.0
    %2237 = vmatpush1.xpose.msra.mxu0 0.0
    %2238 = vmatprep.subr.mxu0 0.0
    %2239 = vmatpush1.xpose.msra.mxu0 0.0
    %2240 = vmatprep.subr.mxu0 0.0
    %2241 = vmatpush1.xpose.msra.mxu0 0.0
    %2242 = vmatprep.subr.mxu0 0.0
    %2243 = vmatpush1.xpose.msra.mxu0 0.0
    %2244 = vmatprep.subr.mxu0 0.0
    %2245 = vmatpush1.xpose.msra.mxu0 0.0
    %2246 = vmatprep.subr.mxu0 0.0
    %2247 = vmatpush1.xpose.msra.mxu0 0.0
    %2248 = vmatprep.subr.mxu0 0.0
    %2249 = vmatpush1.xpose.msra.mxu0 0.0
    %2250 = vmatprep.subr.mxu0 0.0
    %2251 = vmatpush1.xpose.msra.mxu0 0.0
    %2252 = vmatprep.subr.mxu0 0.0
    %2253 = vmatpush1.xpose.msra.mxu0 0.0
    %2254 = vmatprep.subr.mxu0 0.0
    %2255 = vmatpush1.xpose.msra.mxu0 0.0
    %2256 = vmatprep.subr.mxu0 0.0
    %2257 = vmatpush1.xpose.msra.mxu0 0.0
    %2258 = vmatprep.subr.mxu0 0.0
    %2259 = vmatpush1.xpose.msra.mxu0 0.0
    %2260 = vmatprep.subr.mxu0 0.0
    %2261 = vmatpush1.xpose.msra.mxu0 0.0
    %2262 = vmatprep.subr.mxu0 0.0
    %2263 = vmatpush1.xpose.msra.mxu0 0.0
    %2264 = vmatprep.subr.mxu0 0.0
    %2265 = vmatpush1.xpose.msra.mxu0 0.0
    %2266 = vmatprep.subr.mxu0 0.0
    %2267 = vmatpush1.xpose.msra.mxu0 0.0
    %2268 = vmatprep.subr.mxu0 0.0
    %2269 = vmatpush1.xpose.msra.mxu0 0.0
    %2270 = vmatprep.subr.mxu0 0.0
    %2271 = vmatpush1.xpose.msra.mxu0 0.0
    %2272 = vmatprep.subr.mxu0 0.0
    %2273 = vmatpush1.xpose.msra.mxu0 0.0
    %2274 = vmatprep.subr.mxu0 0.0
    %2275 = vmatpush1.xpose.msra.mxu0 0.0
    %2276 = vmatprep.mubr.f32.mxu0 0.0
    %2277 = vmatmul.mubr.f32.gmra.mrb[0].mxu0 %v2207
    %v2278 = vpop.f32.mrb[0].mxu0
    %v2279 = vadd.f32 %v27, %v2278
    %v2280 = vpop.f32.mrb[0].mxu0
    %2281 = vdwg.mxu0
    %v2283 = vsel %vm275, %v2043, 0
    %v2286 = vsel %vm275, %v2123, 0
    %2288 = vmatprep.subr.mxu0 0.0
    %2289 = vmatpush1.xpose.msra.mxu0 %v2286
    %2290 = vmatprep.subr.mxu0 0.0
    %2291 = vmatpush1.xpose.msra.mxu0 0.0
    %2292 = vmatprep.subr.mxu0 0.0
    %2293 = vmatpush1.xpose.msra.mxu0 0.0
    %2294 = vmatprep.subr.mxu0 0.0
    %2295 = vmatpush1.xpose.msra.mxu0 0.0
    %2296 = vmatprep.subr.mxu0 0.0
    %2297 = vmatpush1.xpose.msra.mxu0 0.0
    %2298 = vmatprep.subr.mxu0 0.0
    %2299 = vmatpush1.xpose.msra.mxu0 0.0
    %2300 = vmatprep.subr.mxu0 0.0
    %2301 = vmatpush1.xpose.msra.mxu0 0.0
    %2302 = vmatprep.subr.mxu0 0.0
    %2303 = vmatpush1.xpose.msra.mxu0 0.0
    %2304 = vmatprep.subr.mxu0 0.0
    %2305 = vmatpush1.xpose.msra.mxu0 0.0
    %2306 = vmatprep.subr.mxu0 0.0
    %2307 = vmatpush1.xpose.msra.mxu0 0.0
    %2308 = vmatprep.subr.mxu0 0.0
    %2309 = vmatpush1.xpose.msra.mxu0 0.0
    %2310 = vmatprep.subr.mxu0 0.0
    %2311 = vmatpush1.xpose.msra.mxu0 0.0
    %2312 = vmatprep.subr.mxu0 0.0
    %2313 = vmatpush1.xpose.msra.mxu0 0.0
    %2314 = vmatprep.subr.mxu0 0.0
    %2315 = vmatpush1.xpose.msra.mxu0 0.0
    %2316 = vmatprep.subr.mxu0 0.0
    %2317 = vmatpush1.xpose.msra.mxu0 0.0
    %2318 = vmatprep.subr.mxu0 0.0
    %2319 = vmatpush1.xpose.msra.mxu0 0.0
    %2320 = vmatprep.subr.mxu0 0.0
    %2321 = vmatpush1.xpose.msra.mxu0 0.0
    %2322 = vmatprep.subr.mxu0 0.0
    %2323 = vmatpush1.xpose.msra.mxu0 0.0
    %2324 = vmatprep.subr.mxu0 0.0
    %2325 = vmatpush1.xpose.msra.mxu0 0.0
    %2326 = vmatprep.subr.mxu0 0.0
    %2327 = vmatpush1.xpose.msra.mxu0 0.0
    %2328 = vmatprep.subr.mxu0 0.0
    %2329 = vmatpush1.xpose.msra.mxu0 0.0
    %2330 = vmatprep.subr.mxu0 0.0
    %2331 = vmatpush1.xpose.msra.mxu0 0.0
    %2332 = vmatprep.subr.mxu0 0.0
    %2333 = vmatpush1.xpose.msra.mxu0 0.0
    %2334 = vmatprep.subr.mxu0 0.0
    %2335 = vmatpush1.xpose.msra.mxu0 0.0
    %2336 = vmatprep.subr.mxu0 0.0
    %2337 = vmatpush1.xpose.msra.mxu0 0.0
    %2338 = vmatprep.subr.mxu0 0.0
    %2339 = vmatpush1.xpose.msra.mxu0 0.0
    %2340 = vmatprep.subr.mxu0 0.0
    %2341 = vmatpush1.xpose.msra.mxu0 0.0
    %2342 = vmatprep.subr.mxu0 0.0
    %2343 = vmatpush1.xpose.msra.mxu0 0.0
    %2344 = vmatprep.subr.mxu0 0.0
    %2345 = vmatpush1.xpose.msra.mxu0 0.0
    %2346 = vmatprep.subr.mxu0 0.0
    %2347 = vmatpush1.xpose.msra.mxu0 0.0
    %2348 = vmatprep.subr.mxu0 0.0
    %2349 = vmatpush1.xpose.msra.mxu0 0.0
    %2350 = vmatprep.subr.mxu0 0.0
    %2351 = vmatpush1.xpose.msra.mxu0 0.0
    %2352 = vmatprep.mubr.f32.mxu0 0.0
    %2353 = vmatmul.mubr.f32.gmra.mrb[0].mxu0 %v2283
    %v2354 = vpop.f32.mrb[0].mxu0
    %v2355 = vadd.f32 %v27, %v2354
    %v2356 = vpop.f32.mrb[0].mxu0
    %2357 = vdwg.mxu0
    %v2358 = vsel %vm275, %v2279, -inf
    %2359 = vmax.xlane.f32.xlu0 %v2358
    %v2360 = vpop.xlane.xlu0 %2359
    %v2361 = vsel %vm275, %v2355, -inf
    %2362 = vmax.xlane.f32.xlu0 %v2361
    %v2363 = vpop.xlane.xlu0 %2362
    %v2364 = vsub.f32 %v2279, %v2360
    %v2365 = vsub.f32 %v2355, %v2363
    %v2366 = vmul.f32 %v2364, 1.442695
    %v2367 = vpow.pop %v2366
    %v2368 = vmul.f32 %v2365, 1.442695
    %v2369 = vpow.pop %v2368
    %v2370 = vsel %vm275, %v2367, 0.0
    %2371 = vadd.xlane.f32.xlu0 %v2370
    %v2372 = vpop.xlane.xlu0 %2371
    %v2373 = vsel %vm275, %v2369, 0.0
    %2374 = vadd.xlane.f32.xlu0 %v2373
    %v2375 = vpop.xlane.xlu0 %2374
    %v2376 = vrcp.pop %v2372
    %v2377 = vrcp.pop %v2375
    %v2378 = vmul.f32 %v2367, %v2376
    %v2379 = vmul.f32 %v2369, %v2377
    %v2381 = vsel %vm275, %v2378, 0
    %2383 = vmatprep.subr.mxu0 0.0
    %2384 = vmatpush1.msra.mxu0 %v2198
    %2385 = vmatprep.subr.mxu0 0.0
    %2386 = vmatpush1.msra.mxu0 0.0
    %2387 = vmatprep.subr.mxu0 0.0
    %2388 = vmatpush1.msra.mxu0 0.0
    %2389 = vmatprep.subr.mxu0 0.0
    %2390 = vmatpush1.msra.mxu0 0.0
    %2391 = vmatprep.subr.mxu0 0.0
    %2392 = vmatpush1.msra.mxu0 0.0
    %2393 = vmatprep.subr.mxu0 0.0
    %2394 = vmatpush1.msra.mxu0 0.0
    %2395 = vmatprep.subr.mxu0 0.0
    %2396 = vmatpush1.msra.mxu0 0.0
    %2397 = vmatprep.subr.mxu0 0.0
    %2398 = vmatpush1.msra.mxu0 0.0
    %2399 = vmatprep.subr.mxu0 0.0
    %2400 = vmatpush1.msra.mxu0 0.0
    %2401 = vmatprep.subr.mxu0 0.0
    %2402 = vmatpush1.msra.mxu0 0.0
    %2403 = vmatprep.subr.mxu0 0.0
    %2404 = vmatpush1.msra.mxu0 0.0
    %2405 = vmatprep.subr.mxu0 0.0
    %2406 = vmatpush1.msra.mxu0 0.0
    %2407 = vmatprep.subr.mxu0 0.0
    %2408 = vmatpush1.msra.mxu0 0.0
    %2409 = vmatprep.subr.mxu0 0.0
    %2410 = vmatpush1.msra.mxu0 0.0
    %2411 = vmatprep.subr.mxu0 0.0
    %2412 = vmatpush1.msra.mxu0 0.0
    %2413 = vmatprep.subr.mxu0 0.0
    %2414 = vmatpush1.msra.mxu0 0.0
    %2415 = vmatprep.subr.mxu0 0.0
    %2416 = vmatpush1.msra.mxu0 0.0
    %2417 = vmatprep.subr.mxu0 0.0
    %2418 = vmatpush1.msra.mxu0 0.0
    %2419 = vmatprep.subr.mxu0 0.0
    %2420 = vmatpush1.msra.mxu0 0.0
    %2421 = vmatprep.subr.mxu0 0.0
    %2422 = vmatpush1.msra.mxu0 0.0
    %2423 = vmatprep.subr.mxu0 0.0
    %2424 = vmatpush1.msra.mxu0 0.0
    %2425 = vmatprep.subr.mxu0 0.0
    %2426 = vmatpush1.msra.mxu0 0.0
    %2427 = vmatprep.subr.mxu0 0.0
    %2428 = vmatpush1.msra.mxu0 0.0
    %2429 = vmatprep.subr.mxu0 0.0
    %2430 = vmatpush1.msra.mxu0 0.0
    %2431 = vmatprep.subr.mxu0 0.0
    %2432 = vmatpush1.msra.mxu0 0.0
    %2433 = vmatprep.subr.mxu0 0.0
    %2434 = vmatpush1.msra.mxu0 0.0
    %2435 = vmatprep.subr.mxu0 0.0
    %2436 = vmatpush1.msra.mxu0 0.0
    %2437 = vmatprep.subr.mxu0 0.0
    %2438 = vmatpush1.msra.mxu0 0.0
    %2439 = vmatprep.subr.mxu0 0.0
    %2440 = vmatpush1.msra.mxu0 0.0
    %2441 = vmatprep.subr.mxu0 0.0
    %2442 = vmatpush1.msra.mxu0 0.0
    %2443 = vmatprep.subr.mxu0 0.0
    %2444 = vmatpush1.msra.mxu0 0.0
    %2445 = vmatprep.subr.mxu0 0.0
    %2446 = vmatpush1.msra.mxu0 0.0
    %2447 = vmatprep.mubr.f32.mxu0 0.0
    %2448 = vmatmul.mubr.f32.gmra.mrb[0].mxu0 %v2381
    %v2449 = vpop.f32.mrb[0].mxu0
    %v2450 = vadd.f32 0.0, %v2449
    %v2451 = vpop.f32.mrb[0].mxu0
    %2452 = vdwg.mxu0
    %v2454 = vsel %vm275, %v2379, 0
    %2456 = vmatprep.subr.mxu0 0.0
    %2457 = vmatpush1.msra.mxu0 %v2203
    %2458 = vmatprep.subr.mxu0 0.0
    %2459 = vmatpush1.msra.mxu0 0.0
    %2460 = vmatprep.subr.mxu0 0.0
    %2461 = vmatpush1.msra.mxu0 0.0
    %2462 = vmatprep.subr.mxu0 0.0
    %2463 = vmatpush1.msra.mxu0 0.0
    %2464 = vmatprep.subr.mxu0 0.0
    %2465 = vmatpush1.msra.mxu0 0.0
    %2466 = vmatprep.subr.mxu0 0.0
    %2467 = vmatpush1.msra.mxu0 0.0
    %2468 = vmatprep.subr.mxu0 0.0
    %2469 = vmatpush1.msra.mxu0 0.0
    %2470 = vmatprep.subr.mxu0 0.0
    %2471 = vmatpush1.msra.mxu0 0.0
    %2472 = vmatprep.subr.mxu0 0.0
    %2473 = vmatpush1.msra.mxu0 0.0
    %2474 = vmatprep.subr.mxu0 0.0
    %2475 = vmatpush1.msra.mxu0 0.0
    %2476 = vmatprep.subr.mxu0 0.0
    %2477 = vmatpush1.msra.mxu0 0.0
    %2478 = vmatprep.subr.mxu0 0.0
    %2479 = vmatpush1.msra.mxu0 0.0
    %2480 = vmatprep.subr.mxu0 0.0
    %2481 = vmatpush1.msra.mxu0 0.0
    %2482 = vmatprep.subr.mxu0 0.0
    %2483 = vmatpush1.msra.mxu0 0.0
    %2484 = vmatprep.subr.mxu0 0.0
    %2485 = vmatpush1.msra.mxu0 0.0
    %2486 = vmatprep.subr.mxu0 0.0
    %2487 = vmatpush1.msra.mxu0 0.0
    %2488 = vmatprep.subr.mxu0 0.0
    %2489 = vmatpush1.msra.mxu0 0.0
    %2490 = vmatprep.subr.mxu0 0.0
    %2491 = vmatpush1.msra.mxu0 0.0
    %2492 = vmatprep.subr.mxu0 0.0
    %2493 = vmatpush1.msra.mxu0 0.0
    %2494 = vmatprep.subr.mxu0 0.0
    %2495 = vmatpush1.msra.mxu0 0.0
    %2496 = vmatprep.subr.mxu0 0.0
    %2497 = vmatpush1.msra.mxu0 0.0
    %2498 = vmatprep.subr.mxu0 0.0
    %2499 = vmatpush1.msra.mxu0 0.0
    %2500 = vmatprep.subr.mxu0 0.0
    %2501 = vmatpush1.msra.mxu0 0.0
    %2502 = vmatprep.subr.mxu0 0.0
    %2503 = vmatpush1.msra.mxu0 0.0
    %2504 = vmatprep.subr.mxu0 0.0
    %2505 = vmatpush1.msra.mxu0 0.0
    %2506 = vmatprep.subr.mxu0 0.0
    %2507 = vmatpush1.msra.mxu0 0.0
    %2508 = vmatprep.subr.mxu0 0.0
    %2509 = vmatpush1.msra.mxu0 0.0
    %2510 = vmatprep.subr.mxu0 0.0
    %2511 = vmatpush1.msra.mxu0 0.0
    %2512 = vmatprep.subr.mxu0 0.0
    %2513 = vmatpush1.msra.mxu0 0.0
    %2514 = vmatprep.subr.mxu0 0.0
    %2515 = vmatpush1.msra.mxu0 0.0
    %2516 = vmatprep.subr.mxu0 0.0
    %2517 = vmatpush1.msra.mxu0 0.0
    %2518 = vmatprep.subr.mxu0 0.0
    %2519 = vmatpush1.msra.mxu0 0.0
    %2520 = vmatprep.mubr.f32.mxu0 0.0
    %2521 = vmatmul.mubr.f32.gmra.mrb[0].mxu0 %v2454
    %v2522 = vpop.f32.mrb[0].mxu0
    %v2523 = vadd.f32 0.0, %v2522
    %v2524 = vpop.f32.mrb[0].mxu0
    %2525 = vdwg.mxu0
    %s2526 = scalar_lea.vmem %s5, 24
    %v2527 = vld [vmem:[%s2526] sm:$0xff]
    %v2529 = vsel %vm275, %v2450, 0
    %v2532 = vsel %vm275, %v2523, 0
    %2534 = vmatprep.subr.mxu0 0.0
    %2535 = vmatpush1.msra.mxu0 %v2527
    %2536 = vmatprep.subr.mxu0 0.0
    %2537 = vmatpush1.msra.mxu0 0.0
    %2538 = vmatprep.subr.mxu0 0.0
    %2539 = vmatpush1.msra.mxu0 0.0
    %2540 = vmatprep.subr.mxu0 0.0
    %2541 = vmatpush1.msra.mxu0 0.0
    %2542 = vmatprep.subr.mxu0 0.0
    %2543 = vmatpush1.msra.mxu0 0.0
    %2544 = vmatprep.subr.mxu0 0.0
    %2545 = vmatpush1.msra.mxu0 0.0
    %2546 = vmatprep.subr.mxu0 0.0
    %2547 = vmatpush1.msra.mxu0 0.0
    %2548 = vmatprep.subr.mxu0 0.0
    %2549 = vmatpush1.msra.mxu0 0.0
    %2550 = vmatprep.subr.mxu0 0.0
    %2551 = vmatpush1.msra.mxu0 0.0
    %2552 = vmatprep.subr.mxu0 0.0
    %2553 = vmatpush1.msra.mxu0 0.0
    %2554 = vmatprep.subr.mxu0 0.0
    %2555 = vmatpush1.msra.mxu0 0.0
    %2556 = vmatprep.subr.mxu0 0.0
    %2557 = vmatpush1.msra.mxu0 0.0
    %2558 = vmatprep.subr.mxu0 0.0
    %2559 = vmatpush1.msra.mxu0 0.0
    %2560 = vmatprep.subr.mxu0 0.0
    %2561 = vmatpush1.msra.mxu0 0.0
    %2562 = vmatprep.subr.mxu0 0.0
    %2563 = vmatpush1.msra.mxu0 0.0
    %2564 = vmatprep.subr.mxu0 0.0
    %2565 = vmatpush1.msra.mxu0 0.0
    %2566 = vmatprep.subr.mxu0 0.0
    %2567 = vmatpush1.msra.mxu0 0.0
    %2568 = vmatprep.subr.mxu0 0.0
    %2569 = vmatpush1.msra.mxu0 0.0
    %2570 = vmatprep.subr.mxu0 0.0
    %2571 = vmatpush1.msra.mxu0 0.0
    %2572 = vmatprep.subr.mxu0 0.0
    %2573 = vmatpush1.msra.mxu0 0.0
    %2574 = vmatprep.subr.mxu0 0.0
    %2575 = vmatpush1.msra.mxu0 0.0
    %2576 = vmatprep.subr.mxu0 0.0
    %2577 = vmatpush1.msra.mxu0 0.0
    %2578 = vmatprep.subr.mxu0 0.0
    %2579 = vmatpush1.msra.mxu0 0.0
    %2580 = vmatprep.subr.mxu0 0.0
    %2581 = vmatpush1.msra.mxu0 0.0
    %2582 = vmatprep.subr.mxu0 0.0
    %2583 = vmatpush1.msra.mxu0 0.0
    %2584 = vmatprep.subr.mxu0 0.0
    %2585 = vmatpush1.msra.mxu0 0.0
    %2586 = vmatprep.subr.mxu0 0.0
    %2587 = vmatpush1.msra.mxu0 0.0
    %2588 = vmatprep.subr.mxu0 0.0
    %2589 = vmatpush1.msra.mxu0 0.0
    %2590 = vmatprep.subr.mxu0 0.0
    %2591 = vmatpush1.msra.mxu0 0.0
    %2592 = vmatprep.subr.mxu0 0.0
    %2593 = vmatpush1.msra.mxu0 0.0
    %2594 = vmatprep.subr.mxu0 0.0
    %2595 = vmatpush1.msra.mxu0 0.0
    %2596 = vmatprep.subr.mxu0 0.0
    %2597 = vmatpush1.msra.mxu0 0.0
    %2598 = vmatprep.mubr.f32.mxu0 0.0
    %2599 = vmatmul.mubr.f32.gmra.mrb[0].mxu0 %v2529
    %v2600 = vpop.f32.mrb[0].mxu0
    %v2601 = vadd.f32 0.0, %v2600
    %v2602 = vpop.f32.mrb[0].mxu0
    %2603 = vmatprep.mubr.f32.mxu0 0.0
    %2604 = vmatmul.mubr.f32.gmra.mrb[0].mxu0 %v2532
    %v2605 = vpop.f32.mrb[0].mxu0
    %v2606 = vadd.f32 0.0, %v2605
    %v2607 = vpop.f32.mrb[0].mxu0
    %2608 = vdwg.mxu0
    %v2609 = vadd.f32 %v1964, %v2601
    %v2610 = vadd.f32 %v1965, %v2606
    %v2612 = vlaneseq
    %v2613 = vshrl.u32 %v2612, 7
    %v2614 = vsub.s32 0, %v2613
    %v2615 = vrot.slane %v28, %v2614
    %v2617 = vadd.f32 %v2609, %v2615
    %v2618 = vadd.f32 %v2610, %v2615
    %2619 = vst.msk [vmem:[#allocation2] sm:$0xff] %vm35, %v2617
    %2620 = vst.msk [vmem:[#allocation2 + $0x8] sm:$0xff] %vm35, %v2618
    // Predicated region
    $region30: #{tpu_custom_call.1} parent=1 // pred_check
      _
    $region31: #{tpu_custom_call.1} parent=1 // pred_check_branch
      %2622 = sbr.rel (0) target = $region33
    $region32: #{tpu_custom_call.1} parent=1 // pred_region
      %s2624 = ssub.s32 256, 256
      %2625 = vsyncadd [#allocation3], %s2624
      %s2626 = sshll.u32 [#allocation2], 4
      %s2627 = int_to_ptr.vmem [resolvable:$true] %s2626
      %2632 = dma.vmem_to_hbm [thread:$0]  %s2627, 256, %s7, [#allocation3], 128, 128, 8
    $region33: #{tpu_custom_call.1} parent=1 // pred_fallthru
      _
    // Predicated region
    $region34: #{tpu_custom_call.1} parent=1 // pred_check
      _
    $region35: #{tpu_custom_call.1} parent=1 // pred_check_branch
      %2634 = sbr.rel (0) target = $region37
    $region36: #{tpu_custom_call.1} parent=1 // pred_region
      %2635 = dma.done [#allocation3], 256
    $region37: #{tpu_custom_call.1} parent=1 // pred_fallthru
      _
    %2636 = vsyncpa [#allocation3], 1

</llo_original>
